<compile_context>
chip_gen: v5e
topology: v5e:2x2
jax: 0.10.0
libtpu: 0.0.40
codegen_flags: <defaults>
</compile_context>

<pallas_src>
from functools import partial

import jax
import jax.numpy as jnp
from jax import lax
from jax.experimental import pallas as pl
from jax.experimental.pallas import tpu as pltpu


def _round_up(x, m):
    return ((x + m - 1) // m) * m


def _vmem_capacity_bytes():
    # v7x: 64 MiB / TensorCore, v5e/v6e: 128 MiB. Query when possible.
    try:
        return int(pltpu.get_tpu_info().vmem_capacity_bytes)
    except Exception:
        return 64 * 1024 * 1024  # conservative (v7x per-TC figure)


def _vmem_limit_bytes(required, cap):
    limit = max(2 * required + (8 << 20), 32 << 20)
    return int(min(limit, int(0.9 * cap)))


# --------------------------------------------------------------------------
# Kernel 1: fused im2col slab (best when the slab fits VMEM, e.g. small maps)
# --------------------------------------------------------------------------
def _aspp_slab_kernel(x_ref, w_ref, b_ref, o_ref, slab_ref, *,
                      cin_p, nsp_pad, k_used, shifts):
    """grid = (N, Cout_tiles); one fused MXU contraction per step.

    x_ref   : (1, cin_p, lflat)    flattened zero-padded image (compute dtype)
    w_ref   : (tcout, K_pad)       tap-major / channel-minor packed weights
    b_ref   : (tcout, 1)           branch-summed biases (f32)
    o_ref   : (1, tcout, nsp_pad)  flat NCHW output tile
    slab_ref: (K_pad, nsp_pad)     im2col scratch, built once per batch element
    """
    # Build the slab only on the first Cout tile of each batch element: it
    # depends only on `n`, and both the x block and the scratch stay resident
    # across the inner ("arbitrary") Cout axis.
    @pl.when(pl.program_id(1) == 0)
    def _build_slab():
        for t, shift in enumerate(shifts):      # static unroll over R*9 taps
            slab_ref[t * cin_p:(t + 1) * cin_p, :] = (
                x_ref[0, :, shift:shift + nsp_pad])
        if k_used < slab_ref.shape[0]:          # zero the K-padding tail
            slab_ref[k_used:, :] = jnp.zeros(
                (slab_ref.shape[0] - k_used, nsp_pad), slab_ref.dtype)

    # Single MXU contraction over all rates/taps/channels at once.
    acc = jnp.dot(w_ref[...], slab_ref[...],
                  preferred_element_type=jnp.float32)        # (tcout, nsp_pad)
    o_ref[0] = (acc + b_ref[...]).astype(o_ref.dtype)


# --------------------------------------------------------------------------
# Kernel 2: slab-free per-tap K-reduction (scales to production shapes)
# --------------------------------------------------------------------------
def _aspp_acc_kernel(shift_ref, x_ref, w_ref, b_ref, o_ref, acc_ref, *,
                     nsp_pad):
    """grid = (N, Cout_tiles, R*9 taps); f32 accumulator in VMEM scratch.

    shift_ref: (n_taps,) int32 in SMEM (scalar prefetch) — flat tap offsets.
    """
    t = pl.program_id(2)

    @pl.when(t == 0)
    def _init():
        acc_ref[...] = jnp.zeros_like(acc_ref)

    shift = shift_ref[t]
    xs = x_ref[0, :, pl.ds(shift, nsp_pad)]              # (cin_p, nsp_pad)
    acc_ref[...] += jnp.dot(w_ref[0], xs, preferred_element_type=jnp.float32)

    @pl.when(t == pl.num_programs(2) - 1)
    def _finish():
        o_ref[0] = (acc_ref[...] + b_ref[...]).astype(o_ref.dtype)


# --------------------------------------------------------------------------
# Parameter packing (hoist out of the per-call wrapper / do at load time)
# --------------------------------------------------------------------------
def pack_aspp_params(weights, biases, rates, compute_dtype=jnp.float32):
    """weights: (R, 3, 3, Cin, Cout), biases: (R, Cout)."""
    R, kh, kw, Cin, Cout = weights.shape
    assert (kh, kw) == (3, 3) and R == len(rates)
    cdt = jnp.dtype(compute_dtype)
    esize = cdt.itemsize
    sub = 8 * (4 // esize)            # packed sublane multiple: f32->8, bf16->16
    cin_p = _round_up(Cin, sub)
    n_taps = R * 9
    K = n_taps * cin_p
    K_pad = _round_up(K, 128)
    tcout = 128                       # MXU-row friendly Cout tile
    cout_pad = _round_up(Cout, tcout)

    # (Cout, R, 3, 3, Cin) tap-major / channel-minor; zero-pad Cout and Cin.
    w = jnp.transpose(weights, (4, 0, 1, 2, 3)).astype(cdt)
    w = jnp.pad(w, ((0, cout_pad - Cout), (0, 0), (0, 0), (0, 0),
                    (0, cin_p - Cin)))
    w_tap = w.reshape(cout_pad, n_taps, cin_p)
    w2 = jnp.pad(w_tap.reshape(cout_pad, K), ((0, 0), (0, K_pad - K)))  # slab
    w3 = jnp.transpose(w_tap, (1, 0, 2))                                # acc

    # All branch biases add to the same output -> pre-sum once (kept in f32).
    bias_col = jnp.pad(jnp.sum(biases.astype(jnp.float32), axis=0),
                       (0, cout_pad - Cout)).reshape(cout_pad, 1)

    return dict(rates=tuple(int(r) for r in rates), Cin=Cin, Cout=Cout,
                cin_p=cin_p, cout_pad=cout_pad, tcout=tcout, n_taps=n_taps,
                K=K, K_pad=K_pad, compute_dtype=cdt,
                w2=w2, w3=w3, bias_col=bias_col)


# --------------------------------------------------------------------------
# Forward
# --------------------------------------------------------------------------
def aspp_apply(x_nchw, params, path="auto"):
    N, Cin, H, W = x_nchw.shape
    assert Cin == params["Cin"]
    rates = params["rates"]
    cin_p, cout_pad, tcout = params["cin_p"], params["cout_pad"], params["tcout"]
    n_taps, K, K_pad, Cout = params["n_taps"], params["K"], params["K_pad"], params["Cout"]
    cdt = params["compute_dtype"]
    esize = cdt.itemsize
    out_dtype = x_nchw.dtype
    out_esize = jnp.dtype(out_dtype).itemsize

    pad = max(rates)
    Hp, Wp = H + 2 * pad, W + 2 * pad
    nsp = H * Wp                                  # flat output extent (Wp-wide rows)
    nsp_pad = _round_up(nsp, 128)                 # lane-dense unmasked stores
    max_shift = 2 * pad * Wp + 2 * pad
    lflat = _round_up(max(Hp * Wp, max_shift + nsp_pad), 128)

    # Flat-index shift of every (rate, ky, kx) tap in the padded flat image.
    shifts = tuple((pad + (ky - 1) * r) * Wp + (pad + (kx - 1) * r)
                   for r in rates for ky in range(3) for kx in range(3))

    # ---- thin JAX glue: cast + pad + metadata-level flatten -----------------
    x_p = jnp.pad(x_nchw.astype(cdt),
                  ((0, 0), (0, cin_p - Cin), (pad, pad), (pad, pad)))
    x_flat = x_p.reshape(N, cin_p, Hp * Wp)
    x_flat = jnp.pad(x_flat, ((0, 0), (0, 0), (0, lflat - Hp * Wp)))

    cap = _vmem_capacity_bytes()
    slab_bytes = K_pad * nsp_pad * esize
    if path == "auto":
        path = "slab" if slab_bytes <= min(cap // 4, 24 << 20) else "acc"
    assert path in ("slab", "acc")

    x_blk = cin_p * lflat * esize
    o_blk = tcout * nsp_pad * out_esize
    b_blk = tcout * 128 * 4
    cost = pl.CostEstimate(
        flops=int(2 * N * cout_pad * K_pad * nsp_pad),
        transcendentals=0,
        bytes_accessed=int(x_flat.size * esize + params["w2"].size * esize
                           + params["bias_col"].size * 4
                           + N * cout_pad * nsp_pad * out_esize))

    if path == "slab":
        w_blk = tcout * K_pad * esize
        required = slab_bytes + 2 * (x_blk + w_blk + b_blk + o_blk)
        kernel = partial(_aspp_slab_kernel, cin_p=cin_p, nsp_pad=nsp_pad,
                         k_used=K, shifts=shifts)
        out_flat = pl.pallas_call(
            kernel,
            out_shape=jax.ShapeDtypeStruct((N, cout_pad, nsp_pad), out_dtype),
            grid=(N, cout_pad // tcout),
            in_specs=[
                # Full flat image per batch element; only changes with `n`.
                # TODO(synk): pipeline_mode=pl.Buffered(1) here would halve its
                # VMEM footprint on v7x (no overlap benefit is lost).
                pl.BlockSpec((1, cin_p, lflat), lambda n, c: (n, 0, 0)),
                pl.BlockSpec((tcout, K_pad), lambda n, c: (c, 0)),
                pl.BlockSpec((tcout, 1), lambda n, c: (c, 0)),
            ],
            out_specs=pl.BlockSpec((1, tcout, nsp_pad), lambda n, c: (n, c, 0)),
            scratch_shapes=[pltpu.VMEM((K_pad, nsp_pad), cdt)],
            compiler_params=pltpu.CompilerParams(
                # Cout axis MUST be "arbitrary": the slab is built only at
                # c == 0 and consumed by every later c of the same n.
                dimension_semantics=("parallel", "arbitrary"),
                vmem_limit_bytes=_vmem_limit_bytes(required, cap)),
            cost_estimate=cost,
        )(x_flat, params["w2"], params["bias_col"])
    else:
        w_blk = tcout * max(cin_p, 128) * esize
        required = tcout * nsp_pad * 4 + 2 * (x_blk + w_blk + b_blk + o_blk)
        shifts_arr = jnp.asarray(shifts, dtype=jnp.int32)
        out_flat = pl.pallas_call(
            partial(_aspp_acc_kernel, nsp_pad=nsp_pad),
            out_shape=jax.ShapeDtypeStruct((N, cout_pad, nsp_pad), out_dtype),
            grid_spec=pltpu.PrefetchScalarGridSpec(
                num_scalar_prefetch=1,
                grid=(N, cout_pad // tcout, n_taps),
                in_specs=[
                    pl.BlockSpec((1, cin_p, lflat), lambda n, c, t, sh: (n, 0, 0)),
                    pl.BlockSpec((1, tcout, cin_p), lambda n, c, t, sh: (t, c, 0)),
                    pl.BlockSpec((tcout, 1), lambda n, c, t, sh: (c, 0)),
                ],
                out_specs=pl.BlockSpec((1, tcout, nsp_pad),
                                       lambda n, c, t, sh: (n, c, 0)),
                scratch_shapes=[pltpu.VMEM((tcout, nsp_pad), jnp.float32)],
            ),
            compiler_params=pltpu.CompilerParams(
                dimension_semantics=("parallel", "parallel", "arbitrary"),
                vmem_limit_bytes=_vmem_limit_bytes(required, cap)),
            cost_estimate=cost,
        )(shifts_arr, x_flat, params["w3"], params["bias_col"])

    # Crop Cout padding, lane padding and the Wp-wide rows back to W.
    # TODO(synk): keep the padded layout for the consumer / fuse this crop into
    # the next op to avoid an extra HBM pass over the output.
    return out_flat[:, :Cout, :nsp].reshape(N, Cout, H, Wp)[:, :, :, :W]


def aspp_forward(x_nchw, weights, biases, rates, compute_dtype=None, path="auto"):
    """weights: (R, 3, 3, Cin, Cout), biases: (R, Cout), x: NCHW -> NCHW."""
    if compute_dtype is None:
        compute_dtype = x_nchw.dtype
    params = pack_aspp_params(weights, biases, rates, compute_dtype)
    return aspp_apply(x_nchw, params, path=path)


def aspp_reference(x_nchw, weights, biases, rates):
    """Pure-JAX reference mirroring the PyTorch forward exactly."""
    out = None
    for r_idx, rate in enumerate(rates):
        w_oihw = jnp.transpose(weights[r_idx], (3, 2, 0, 1))  # (Cout,Cin,3,3)
        y = lax.conv_general_dilated(
            x_nchw, w_oihw,
            window_strides=(1, 1),
            padding=[(rate, rate), (rate, rate)],
            rhs_dilation=(rate, rate),
            dimension_numbers=("NCHW", "OIHW", "NCHW"),
        )
        y = y + biases[r_idx][None, :, None, None]
        out = y if out is None else out + y
    return out


if __name__ == "__main__":
    # Small shapes consistent with the module: _ASPP(in_ch=4, out_ch=4, rates)
    N, Cin, Cout, H, W = 2, 4, 4, 16, 16
    rates = (1, 2, 3, 4)   # scaled-down analogue of DeepLab's [6, 12, 18, 24]
    R = len(rates)

    key = jax.random.PRNGKey(0)
    kx_, kw_, kb_ = jax.random.split(key, 3)
    x = jax.random.normal(kx_, (N, Cin, H, W), dtype=jnp.float32)

    # PyTorch: nn.init.normal_(weight, std=0.01); weight layout (Cout,Cin,3,3).
    w_torchlike = 0.01 * jax.random.normal(
        kw_, (R, Cout, Cin, 3, 3), dtype=jnp.float32)
    weights = jnp.transpose(w_torchlike, (0, 3, 4, 2, 1))     # (R,3,3,Cin,Cout)
    # The module inits biases to 0; use small nonzero values here so the
    # bias path is actually exercised by the correctness check.
    biases = 0.1 * jax.random.normal(kb_, (R, Cout), dtype=jnp.float32)

    ref = aspp_reference(x, weights, biases, rates)

    # 1) f32, fused-slab path (default at these shapes).
    out = jax.block_until_ready(aspp_forward(x, weights, biases, rates))
    assert out.shape == (N, Cout, H, W)
    assert jnp.allclose(out, ref, atol=1e-4, rtol=1e-4), "slab path mismatch"

    # 2) f32, slab-free per-tap accumulation path (production structure).
    out_acc = jax.block_until_ready(
        aspp_forward(x, weights, biases, rates, path="acc"))
    assert jnp.allclose(out_acc, ref, atol=1e-4, rtol=1e-4), "acc path mismatch"

    # 3) bf16 operands (v6e/v7x MXU rate, half the DMA/VMEM traffic), f32 acc.
    out_bf16 = jax.block_until_ready(
        aspp_forward(x, weights, biases, rates, compute_dtype=jnp.bfloat16))
    assert jnp.allclose(out_bf16, ref, atol=5e-2, rtol=5e-2), "bf16 path mismatch"

    print("KERNEL_OK")
</pallas_src>

<mosaic_0001>
module attributes {stable_mosaic.version = 11 : i64} {
  func.func @_aspp_slab_kernel(%arg0: i32, %arg1: i32, %arg2: memref<1x8x640xf32, #tpu.memory_space<vmem>>, %arg3: memref<128x384xf32, #tpu.memory_space<vmem>>, %arg4: memref<128x1xf32, #tpu.memory_space<vmem>>, %arg5: memref<1x128x384xf32, #tpu.memory_space<vmem>>, %arg6: memref<384x384xf32, #tpu.memory_space<vmem>>) attributes {dimension_semantics = [#tpu.dimension_semantics<parallel>, #tpu.dimension_semantics<arbitrary>], iteration_bounds = array<i64: 2, 1>, scalar_prefetch = 0 : i64, scratch_operands = 1 : i64, tpu.core_type = #tpu.core_type<tc>, window_params = [{transform_indices = @transform_0, window_bounds = array<i64: 1, 8, 640>}, {transform_indices = @transform_1, window_bounds = array<i64: 128, 384>}, {transform_indices = @transform_2, window_bounds = array<i64: 128, 1>}, {transform_indices = @transform_3, window_bounds = array<i64: 1, 128, 384>}]} {
    %c0_i32 = arith.constant 0 : i32
    %0 = arith.cmpi eq, %arg1, %c0_i32 : i32
    %1 = arith.extui %0 : i1 to i32
    %c0_i32_0 = arith.constant 0 : i32
    %2 = arith.cmpi ne, %1, %c0_i32_0 : i32
    scf.if %2 {
      %c0_9 = arith.constant 0 : index
      %c0_10 = arith.constant 0 : index
      %c75 = arith.constant 75 : index
      %12 = vector.load %arg2[%c0_9, %c0_10, %c75] : memref<1x8x640xf32, #tpu.memory_space<vmem>>, vector<1x8x384xf32>
      %13 = vector.shape_cast %12 : vector<1x8x384xf32> to vector<8x384xf32>
      %c0_11 = arith.constant 0 : index
      %c0_12 = arith.constant 0 : index
      %14 = vector.load %arg6[%c0_11, %c0_12] : memref<384x384xf32, #tpu.memory_space<vmem>>, vector<8x384xf32>
      tpu.vector_store %arg6[%c0_11, %c0_12], %13 {strides = array<i32>} : memref<384x384xf32, #tpu.memory_space<vmem>>, vector<8x384xf32>,
      %c0_13 = arith.constant 0 : index
      %c0_14 = arith.constant 0 : index
      %c76 = arith.constant 76 : index
      %15 = vector.load %arg2[%c0_13, %c0_14, %c76] : memref<1x8x640xf32, #tpu.memory_space<vmem>>, vector<1x8x384xf32>
      %16 = vector.shape_cast %15 : vector<1x8x384xf32> to vector<8x384xf32>
      %c8 = arith.constant 8 : index
      %c0_15 = arith.constant 0 : index
      %17 = vector.load %arg6[%c8, %c0_15] : memref<384x384xf32, #tpu.memory_space<vmem>>, vector<8x384xf32>
      tpu.vector_store %arg6[%c8, %c0_15], %16 {strides = array<i32>} : memref<384x384xf32, #tpu.memory_space<vmem>>, vector<8x384xf32>,
      %c0_16 = arith.constant 0 : index
      %c0_17 = arith.constant 0 : index
      %c77 = arith.constant 77 : index
      %18 = vector.load %arg2[%c0_16, %c0_17, %c77] : memref<1x8x640xf32, #tpu.memory_space<vmem>>, vector<1x8x384xf32>
      %19 = vector.shape_cast %18 : vector<1x8x384xf32> to vector<8x384xf32>
      %c16 = arith.constant 16 : index
      %c0_18 = arith.constant 0 : index
      %20 = vector.load %arg6[%c16, %c0_18] : memref<384x384xf32, #tpu.memory_space<vmem>>, vector<8x384xf32>
      tpu.vector_store %arg6[%c16, %c0_18], %19 {strides = array<i32>} : memref<384x384xf32, #tpu.memory_space<vmem>>, vector<8x384xf32>,
      %c0_19 = arith.constant 0 : index
      %c0_20 = arith.constant 0 : index
      %c99 = arith.constant 99 : index
      %21 = vector.load %arg2[%c0_19, %c0_20, %c99] : memref<1x8x640xf32, #tpu.memory_space<vmem>>, vector<1x8x384xf32>
      %22 = vector.shape_cast %21 : vector<1x8x384xf32> to vector<8x384xf32>
      %c24 = arith.constant 24 : index
      %c0_21 = arith.constant 0 : index
      %23 = vector.load %arg6[%c24, %c0_21] : memref<384x384xf32, #tpu.memory_space<vmem>>, vector<8x384xf32>
      tpu.vector_store %arg6[%c24, %c0_21], %22 {strides = array<i32>} : memref<384x384xf32, #tpu.memory_space<vmem>>, vector<8x384xf32>,
      %c0_22 = arith.constant 0 : index
      %c0_23 = arith.constant 0 : index
      %c100 = arith.constant 100 : index
      %24 = vector.load %arg2[%c0_22, %c0_23, %c100] : memref<1x8x640xf32, #tpu.memory_space<vmem>>, vector<1x8x384xf32>
      %25 = vector.shape_cast %24 : vector<1x8x384xf32> to vector<8x384xf32>
      %c32 = arith.constant 32 : index
      %c0_24 = arith.constant 0 : index
      %26 = vector.load %arg6[%c32, %c0_24] : memref<384x384xf32, #tpu.memory_space<vmem>>, vector<8x384xf32>
      tpu.vector_store %arg6[%c32, %c0_24], %25 {strides = array<i32>} : memref<384x384xf32, #tpu.memory_space<vmem>>, vector<8x384xf32>,
      %c0_25 = arith.constant 0 : index
      %c0_26 = arith.constant 0 : index
      %c101 = arith.constant 101 : index
      %27 = vector.load %arg2[%c0_25, %c0_26, %c101] : memref<1x8x640xf32, #tpu.memory_space<vmem>>, vector<1x8x384xf32>
      %28 = vector.shape_cast %27 : vector<1x8x384xf32> to vector<8x384xf32>
      %c40 = arith.constant 40 : index
      %c0_27 = arith.constant 0 : index
      %29 = vector.load %arg6[%c40, %c0_27] : memref<384x384xf32, #tpu.memory_space<vmem>>, vector<8x384xf32>
      tpu.vector_store %arg6[%c40, %c0_27], %28 {strides = array<i32>} : memref<384x384xf32, #tpu.memory_space<vmem>>, vector<8x384xf32>,
      %c0_28 = arith.constant 0 : index
      %c0_29 = arith.constant 0 : index
      %c123 = arith.constant 123 : index
      %30 = vector.load %arg2[%c0_28, %c0_29, %c123] : memref<1x8x640xf32, #tpu.memory_space<vmem>>, vector<1x8x384xf32>
      %31 = vector.shape_cast %30 : vector<1x8x384xf32> to vector<8x384xf32>
      %c48 = arith.constant 48 : index
      %c0_30 = arith.constant 0 : index
      %32 = vector.load %arg6[%c48, %c0_30] : memref<384x384xf32, #tpu.memory_space<vmem>>, vector<8x384xf32>
      tpu.vector_store %arg6[%c48, %c0_30], %31 {strides = array<i32>} : memref<384x384xf32, #tpu.memory_space<vmem>>, vector<8x384xf32>,
      %c0_31 = arith.constant 0 : index
      %c0_32 = arith.constant 0 : index
      %c124 = arith.constant 124 : index
      %33 = vector.load %arg2[%c0_31, %c0_32, %c124] : memref<1x8x640xf32, #tpu.memory_space<vmem>>, vector<1x8x384xf32>
      %34 = vector.shape_cast %33 : vector<1x8x384xf32> to vector<8x384xf32>
      %c56 = arith.constant 56 : index
      %c0_33 = arith.constant 0 : index
      %35 = vector.load %arg6[%c56, %c0_33] : memref<384x384xf32, #tpu.memory_space<vmem>>, vector<8x384xf32>
      tpu.vector_store %arg6[%c56, %c0_33], %34 {strides = array<i32>} : memref<384x384xf32, #tpu.memory_space<vmem>>, vector<8x384xf32>,
      %c0_34 = arith.constant 0 : index
      %c0_35 = arith.constant 0 : index
      %c125 = arith.constant 125 : index
      %36 = vector.load %arg2[%c0_34, %c0_35, %c125] : memref<1x8x640xf32, #tpu.memory_space<vmem>>, vector<1x8x384xf32>
      %37 = vector.shape_cast %36 : vector<1x8x384xf32> to vector<8x384xf32>
      %c64 = arith.constant 64 : index
      %c0_36 = arith.constant 0 : index
      %38 = vector.load %arg6[%c64, %c0_36] : memref<384x384xf32, #tpu.memory_space<vmem>>, vector<8x384xf32>
      tpu.vector_store %arg6[%c64, %c0_36], %37 {strides = array<i32>} : memref<384x384xf32, #tpu.memory_space<vmem>>, vector<8x384xf32>,
      %c0_37 = arith.constant 0 : index
      %c0_38 = arith.constant 0 : index
      %c50 = arith.constant 50 : index
      %39 = vector.load %arg2[%c0_37, %c0_38, %c50] : memref<1x8x640xf32, #tpu.memory_space<vmem>>, vector<1x8x384xf32>
      %40 = vector.shape_cast %39 : vector<1x8x384xf32> to vector<8x384xf32>
      %c72 = arith.constant 72 : index
      %c0_39 = arith.constant 0 : index
      %41 = vector.load %arg6[%c72, %c0_39] : memref<384x384xf32, #tpu.memory_space<vmem>>, vector<8x384xf32>
      tpu.vector_store %arg6[%c72, %c0_39], %40 {strides = array<i32>} : memref<384x384xf32, #tpu.memory_space<vmem>>, vector<8x384xf32>,
      %c0_40 = arith.constant 0 : index
      %c0_41 = arith.constant 0 : index
      %c52 = arith.constant 52 : index
      %42 = vector.load %arg2[%c0_40, %c0_41, %c52] : memref<1x8x640xf32, #tpu.memory_space<vmem>>, vector<1x8x384xf32>
      %43 = vector.shape_cast %42 : vector<1x8x384xf32> to vector<8x384xf32>
      %c80 = arith.constant 80 : index
      %c0_42 = arith.constant 0 : index
      %44 = vector.load %arg6[%c80, %c0_42] : memref<384x384xf32, #tpu.memory_space<vmem>>, vector<8x384xf32>
      tpu.vector_store %arg6[%c80, %c0_42], %43 {strides = array<i32>} : memref<384x384xf32, #tpu.memory_space<vmem>>, vector<8x384xf32>,
      %c0_43 = arith.constant 0 : index
      %c0_44 = arith.constant 0 : index
      %c54 = arith.constant 54 : index
      %45 = vector.load %arg2[%c0_43, %c0_44, %c54] : memref<1x8x640xf32, #tpu.memory_space<vmem>>, vector<1x8x384xf32>
      %46 = vector.shape_cast %45 : vector<1x8x384xf32> to vector<8x384xf32>
      %c88 = arith.constant 88 : index
      %c0_45 = arith.constant 0 : index
      %47 = vector.load %arg6[%c88, %c0_45] : memref<384x384xf32, #tpu.memory_space<vmem>>, vector<8x384xf32>
      tpu.vector_store %arg6[%c88, %c0_45], %46 {strides = array<i32>} : memref<384x384xf32, #tpu.memory_space<vmem>>, vector<8x384xf32>,
      %c0_46 = arith.constant 0 : index
      %c0_47 = arith.constant 0 : index
      %c98 = arith.constant 98 : index
      %48 = vector.load %arg2[%c0_46, %c0_47, %c98] : memref<1x8x640xf32, #tpu.memory_space<vmem>>, vector<1x8x384xf32>
      %49 = vector.shape_cast %48 : vector<1x8x384xf32> to vector<8x384xf32>
      %c96 = arith.constant 96 : index
      %c0_48 = arith.constant 0 : index
      %50 = vector.load %arg6[%c96, %c0_48] : memref<384x384xf32, #tpu.memory_space<vmem>>, vector<8x384xf32>
      tpu.vector_store %arg6[%c96, %c0_48], %49 {strides = array<i32>} : memref<384x384xf32, #tpu.memory_space<vmem>>, vector<8x384xf32>,
      %c0_49 = arith.constant 0 : index
      %c0_50 = arith.constant 0 : index
      %c100_51 = arith.constant 100 : index
      %51 = vector.load %arg2[%c0_49, %c0_50, %c100_51] : memref<1x8x640xf32, #tpu.memory_space<vmem>>, vector<1x8x384xf32>
      %52 = vector.shape_cast %51 : vector<1x8x384xf32> to vector<8x384xf32>
      %c104 = arith.constant 104 : index
      %c0_52 = arith.constant 0 : index
      %53 = vector.load %arg6[%c104, %c0_52] : memref<384x384xf32, #tpu.memory_space<vmem>>, vector<8x384xf32>
      tpu.vector_store %arg6[%c104, %c0_52], %52 {strides = array<i32>} : memref<384x384xf32, #tpu.memory_space<vmem>>, vector<8x384xf32>,
      %c0_53 = arith.constant 0 : index
      %c0_54 = arith.constant 0 : index
      %c102 = arith.constant 102 : index
      %54 = vector.load %arg2[%c0_53, %c0_54, %c102] : memref<1x8x640xf32, #tpu.memory_space<vmem>>, vector<1x8x384xf32>
      %55 = vector.shape_cast %54 : vector<1x8x384xf32> to vector<8x384xf32>
      %c112 = arith.constant 112 : index
      %c0_55 = arith.constant 0 : index
      %56 = vector.load %arg6[%c112, %c0_55] : memref<384x384xf32, #tpu.memory_space<vmem>>, vector<8x384xf32>
      tpu.vector_store %arg6[%c112, %c0_55], %55 {strides = array<i32>} : memref<384x384xf32, #tpu.memory_space<vmem>>, vector<8x384xf32>,
      %c0_56 = arith.constant 0 : index
      %c0_57 = arith.constant 0 : index
      %c146 = arith.constant 146 : index
      %57 = vector.load %arg2[%c0_56, %c0_57, %c146] : memref<1x8x640xf32, #tpu.memory_space<vmem>>, vector<1x8x384xf32>
      %58 = vector.shape_cast %57 : vector<1x8x384xf32> to vector<8x384xf32>
      %c120 = arith.constant 120 : index
      %c0_58 = arith.constant 0 : index
      %59 = vector.load %arg6[%c120, %c0_58] : memref<384x384xf32, #tpu.memory_space<vmem>>, vector<8x384xf32>
      tpu.vector_store %arg6[%c120, %c0_58], %58 {strides = array<i32>} : memref<384x384xf32, #tpu.memory_space<vmem>>, vector<8x384xf32>,
      %c0_59 = arith.constant 0 : index
      %c0_60 = arith.constant 0 : index
      %c148 = arith.constant 148 : index
      %60 = vector.load %arg2[%c0_59, %c0_60, %c148] : memref<1x8x640xf32, #tpu.memory_space<vmem>>, vector<1x8x384xf32>
      %61 = vector.shape_cast %60 : vector<1x8x384xf32> to vector<8x384xf32>
      %c128 = arith.constant 128 : index
      %c0_61 = arith.constant 0 : index
      %62 = vector.load %arg6[%c128, %c0_61] : memref<384x384xf32, #tpu.memory_space<vmem>>, vector<8x384xf32>
      tpu.vector_store %arg6[%c128, %c0_61], %61 {strides = array<i32>} : memref<384x384xf32, #tpu.memory_space<vmem>>, vector<8x384xf32>,
      %c0_62 = arith.constant 0 : index
      %c0_63 = arith.constant 0 : index
      %c150 = arith.constant 150 : index
      %63 = vector.load %arg2[%c0_62, %c0_63, %c150] : memref<1x8x640xf32, #tpu.memory_space<vmem>>, vector<1x8x384xf32>
      %64 = vector.shape_cast %63 : vector<1x8x384xf32> to vector<8x384xf32>
      %c136 = arith.constant 136 : index
      %c0_64 = arith.constant 0 : index
      %65 = vector.load %arg6[%c136, %c0_64] : memref<384x384xf32, #tpu.memory_space<vmem>>, vector<8x384xf32>
      tpu.vector_store %arg6[%c136, %c0_64], %64 {strides = array<i32>} : memref<384x384xf32, #tpu.memory_space<vmem>>, vector<8x384xf32>,
      %c0_65 = arith.constant 0 : index
      %c0_66 = arith.constant 0 : index
      %c25 = arith.constant 25 : index
      %66 = vector.load %arg2[%c0_65, %c0_66, %c25] : memref<1x8x640xf32, #tpu.memory_space<vmem>>, vector<1x8x384xf32>
      %67 = vector.shape_cast %66 : vector<1x8x384xf32> to vector<8x384xf32>
      %c144 = arith.constant 144 : index
      %c0_67 = arith.constant 0 : index
      %68 = vector.load %arg6[%c144, %c0_67] : memref<384x384xf32, #tpu.memory_space<vmem>>, vector<8x384xf32>
      tpu.vector_store %arg6[%c144, %c0_67], %67 {strides = array<i32>} : memref<384x384xf32, #tpu.memory_space<vmem>>, vector<8x384xf32>,
      %c0_68 = arith.constant 0 : index
      %c0_69 = arith.constant 0 : index
      %c28 = arith.constant 28 : index
      %69 = vector.load %arg2[%c0_68, %c0_69, %c28] : memref<1x8x640xf32, #tpu.memory_space<vmem>>, vector<1x8x384xf32>
      %70 = vector.shape_cast %69 : vector<1x8x384xf32> to vector<8x384xf32>
      %c152 = arith.constant 152 : index
      %c0_70 = arith.constant 0 : index
      %71 = vector.load %arg6[%c152, %c0_70] : memref<384x384xf32, #tpu.memory_space<vmem>>, vector<8x384xf32>
      tpu.vector_store %arg6[%c152, %c0_70], %70 {strides = array<i32>} : memref<384x384xf32, #tpu.memory_space<vmem>>, vector<8x384xf32>,
      %c0_71 = arith.constant 0 : index
      %c0_72 = arith.constant 0 : index
      %c31 = arith.constant 31 : index
      %72 = vector.load %arg2[%c0_71, %c0_72, %c31] : memref<1x8x640xf32, #tpu.memory_space<vmem>>, vector<1x8x384xf32>
      %73 = vector.shape_cast %72 : vector<1x8x384xf32> to vector<8x384xf32>
      %c160 = arith.constant 160 : index
      %c0_73 = arith.constant 0 : index
      %74 = vector.load %arg6[%c160, %c0_73] : memref<384x384xf32, #tpu.memory_space<vmem>>, vector<8x384xf32>
      tpu.vector_store %arg6[%c160, %c0_73], %73 {strides = array<i32>} : memref<384x384xf32, #tpu.memory_space<vmem>>, vector<8x384xf32>,
      %c0_74 = arith.constant 0 : index
      %c0_75 = arith.constant 0 : index
      %c97 = arith.constant 97 : index
      %75 = vector.load %arg2[%c0_74, %c0_75, %c97] : memref<1x8x640xf32, #tpu.memory_space<vmem>>, vector<1x8x384xf32>
      %76 = vector.shape_cast %75 : vector<1x8x384xf32> to vector<8x384xf32>
      %c168 = arith.constant 168 : index
      %c0_76 = arith.constant 0 : index
      %77 = vector.load %arg6[%c168, %c0_76] : memref<384x384xf32, #tpu.memory_space<vmem>>, vector<8x384xf32>
      tpu.vector_store %arg6[%c168, %c0_76], %76 {strides = array<i32>} : memref<384x384xf32, #tpu.memory_space<vmem>>, vector<8x384xf32>,
      %c0_77 = arith.constant 0 : index
      %c0_78 = arith.constant 0 : index
      %c100_79 = arith.constant 100 : index
      %78 = vector.load %arg2[%c0_77, %c0_78, %c100_79] : memref<1x8x640xf32, #tpu.memory_space<vmem>>, vector<1x8x384xf32>
      %79 = vector.shape_cast %78 : vector<1x8x384xf32> to vector<8x384xf32>
      %c176 = arith.constant 176 : index
      %c0_80 = arith.constant 0 : index
      %80 = vector.load %arg6[%c176, %c0_80] : memref<384x384xf32, #tpu.memory_space<vmem>>, vector<8x384xf32>
      tpu.vector_store %arg6[%c176, %c0_80], %79 {strides = array<i32>} : memref<384x384xf32, #tpu.memory_space<vmem>>, vector<8x384xf32>,
      %c0_81 = arith.constant 0 : index
      %c0_82 = arith.constant 0 : index
      %c103 = arith.constant 103 : index
      %81 = vector.load %arg2[%c0_81, %c0_82, %c103] : memref<1x8x640xf32, #tpu.memory_space<vmem>>, vector<1x8x384xf32>
      %82 = vector.shape_cast %81 : vector<1x8x384xf32> to vector<8x384xf32>
      %c184 = arith.constant 184 : index
      %c0_83 = arith.constant 0 : index
      %83 = vector.load %arg6[%c184, %c0_83] : memref<384x384xf32, #tpu.memory_space<vmem>>, vector<8x384xf32>
      tpu.vector_store %arg6[%c184, %c0_83], %82 {strides = array<i32>} : memref<384x384xf32, #tpu.memory_space<vmem>>, vector<8x384xf32>,
      %c0_84 = arith.constant 0 : index
      %c0_85 = arith.constant 0 : index
      %c169 = arith.constant 169 : index
      %84 = vector.load %arg2[%c0_84, %c0_85, %c169] : memref<1x8x640xf32, #tpu.memory_space<vmem>>, vector<1x8x384xf32>
      %85 = vector.shape_cast %84 : vector<1x8x384xf32> to vector<8x384xf32>
      %c192 = arith.constant 192 : index
      %c0_86 = arith.constant 0 : index
      %86 = vector.load %arg6[%c192, %c0_86] : memref<384x384xf32, #tpu.memory_space<vmem>>, vector<8x384xf32>
      tpu.vector_store %arg6[%c192, %c0_86], %85 {strides = array<i32>} : memref<384x384xf32, #tpu.memory_space<vmem>>, vector<8x384xf32>,
      %c0_87 = arith.constant 0 : index
      %c0_88 = arith.constant 0 : index
      %c172 = arith.constant 172 : index
      %87 = vector.load %arg2[%c0_87, %c0_88, %c172] : memref<1x8x640xf32, #tpu.memory_space<vmem>>, vector<1x8x384xf32>
      %88 = vector.shape_cast %87 : vector<1x8x384xf32> to vector<8x384xf32>
      %c200 = arith.constant 200 : index
      %c0_89 = arith.constant 0 : index
      %89 = vector.load %arg6[%c200, %c0_89] : memref<384x384xf32, #tpu.memory_space<vmem>>, vector<8x384xf32>
      tpu.vector_store %arg6[%c200, %c0_89], %88 {strides = array<i32>} : memref<384x384xf32, #tpu.memory_space<vmem>>, vector<8x384xf32>,
      %c0_90 = arith.constant 0 : index
      %c0_91 = arith.constant 0 : index
      %c175 = arith.constant 175 : index
      %90 = vector.load %arg2[%c0_90, %c0_91, %c175] : memref<1x8x640xf32, #tpu.memory_space<vmem>>, vector<1x8x384xf32>
      %91 = vector.shape_cast %90 : vector<1x8x384xf32> to vector<8x384xf32>
      %c208 = arith.constant 208 : index
      %c0_92 = arith.constant 0 : index
      %92 = vector.load %arg6[%c208, %c0_92] : memref<384x384xf32, #tpu.memory_space<vmem>>, vector<8x384xf32>
      tpu.vector_store %arg6[%c208, %c0_92], %91 {strides = array<i32>} : memref<384x384xf32, #tpu.memory_space<vmem>>, vector<8x384xf32>,
      %c0_93 = arith.constant 0 : index
      %c0_94 = arith.constant 0 : index
      %c0_95 = arith.constant 0 : index
      %93 = vector.load %arg2[%c0_93, %c0_94, %c0_95] : memref<1x8x640xf32, #tpu.memory_space<vmem>>, vector<1x8x384xf32>
      %94 = vector.shape_cast %93 : vector<1x8x384xf32> to vector<8x384xf32>
      %c216 = arith.constant 216 : index
      %c0_96 = arith.constant 0 : index
      %95 = vector.load %arg6[%c216, %c0_96] : memref<384x384xf32, #tpu.memory_space<vmem>>, vector<8x384xf32>
      tpu.vector_store %arg6[%c216, %c0_96], %94 {strides = array<i32>} : memref<384x384xf32, #tpu.memory_space<vmem>>, vector<8x384xf32>,
      %c0_97 = arith.constant 0 : index
      %c0_98 = arith.constant 0 : index
      %c4 = arith.constant 4 : index
      %96 = vector.load %arg2[%c0_97, %c0_98, %c4] : memref<1x8x640xf32, #tpu.memory_space<vmem>>, vector<1x8x384xf32>
      %97 = vector.shape_cast %96 : vector<1x8x384xf32> to vector<8x384xf32>
      %c224 = arith.constant 224 : index
      %c0_99 = arith.constant 0 : index
      %98 = vector.load %arg6[%c224, %c0_99] : memref<384x384xf32, #tpu.memory_space<vmem>>, vector<8x384xf32>
      tpu.vector_store %arg6[%c224, %c0_99], %97 {strides = array<i32>} : memref<384x384xf32, #tpu.memory_space<vmem>>, vector<8x384xf32>,
      %c0_100 = arith.constant 0 : index
      %c0_101 = arith.constant 0 : index
      %c8_102 = arith.constant 8 : index
      %99 = vector.load %arg2[%c0_100, %c0_101, %c8_102] : memref<1x8x640xf32, #tpu.memory_space<vmem>>, vector<1x8x384xf32>
      %100 = vector.shape_cast %99 : vector<1x8x384xf32> to vector<8x384xf32>
      %c232 = arith.constant 232 : index
      %c0_103 = arith.constant 0 : index
      %101 = vector.load %arg6[%c232, %c0_103] : memref<384x384xf32, #tpu.memory_space<vmem>>, vector<8x384xf32>
      tpu.vector_store %arg6[%c232, %c0_103], %100 {strides = array<i32>} : memref<384x384xf32, #tpu.memory_space<vmem>>, vector<8x384xf32>,
      %c0_104 = arith.constant 0 : index
      %c0_105 = arith.constant 0 : index
      %c96_106 = arith.constant 96 : index
      %102 = vector.load %arg2[%c0_104, %c0_105, %c96_106] : memref<1x8x640xf32, #tpu.memory_space<vmem>>, vector<1x8x384xf32>
      %103 = vector.shape_cast %102 : vector<1x8x384xf32> to vector<8x384xf32>
      %c240 = arith.constant 240 : index
      %c0_107 = arith.constant 0 : index
      %104 = vector.load %arg6[%c240, %c0_107] : memref<384x384xf32, #tpu.memory_space<vmem>>, vector<8x384xf32>
      tpu.vector_store %arg6[%c240, %c0_107], %103 {strides = array<i32>} : memref<384x384xf32, #tpu.memory_space<vmem>>, vector<8x384xf32>,
      %c0_108 = arith.constant 0 : index
      %c0_109 = arith.constant 0 : index
      %c100_110 = arith.constant 100 : index
      %105 = vector.load %arg2[%c0_108, %c0_109, %c100_110] : memref<1x8x640xf32, #tpu.memory_space<vmem>>, vector<1x8x384xf32>
      %106 = vector.shape_cast %105 : vector<1x8x384xf32> to vector<8x384xf32>
      %c248 = arith.constant 248 : index
      %c0_111 = arith.constant 0 : index
      %107 = vector.load %arg6[%c248, %c0_111] : memref<384x384xf32, #tpu.memory_space<vmem>>, vector<8x384xf32>
      tpu.vector_store %arg6[%c248, %c0_111], %106 {strides = array<i32>} : memref<384x384xf32, #tpu.memory_space<vmem>>, vector<8x384xf32>,
      %c0_112 = arith.constant 0 : index
      %c0_113 = arith.constant 0 : index
      %c104_114 = arith.constant 104 : index
      %108 = vector.load %arg2[%c0_112, %c0_113, %c104_114] : memref<1x8x640xf32, #tpu.memory_space<vmem>>, vector<1x8x384xf32>
      %109 = vector.shape_cast %108 : vector<1x8x384xf32> to vector<8x384xf32>
      %c256 = arith.constant 256 : index
      %c0_115 = arith.constant 0 : index
      %110 = vector.load %arg6[%c256, %c0_115] : memref<384x384xf32, #tpu.memory_space<vmem>>, vector<8x384xf32>
      tpu.vector_store %arg6[%c256, %c0_115], %109 {strides = array<i32>} : memref<384x384xf32, #tpu.memory_space<vmem>>, vector<8x384xf32>,
      %c0_116 = arith.constant 0 : index
      %c0_117 = arith.constant 0 : index
      %c192_118 = arith.constant 192 : index
      %111 = vector.load %arg2[%c0_116, %c0_117, %c192_118] : memref<1x8x640xf32, #tpu.memory_space<vmem>>, vector<1x8x384xf32>
      %112 = vector.shape_cast %111 : vector<1x8x384xf32> to vector<8x384xf32>
      %c264 = arith.constant 264 : index
      %c0_119 = arith.constant 0 : index
      %113 = vector.load %arg6[%c264, %c0_119] : memref<384x384xf32, #tpu.memory_space<vmem>>, vector<8x384xf32>
      tpu.vector_store %arg6[%c264, %c0_119], %112 {strides = array<i32>} : memref<384x384xf32, #tpu.memory_space<vmem>>, vector<8x384xf32>,
      %c0_120 = arith.constant 0 : index
      %c0_121 = arith.constant 0 : index
      %c196 = arith.constant 196 : index
      %114 = vector.load %arg2[%c0_120, %c0_121, %c196] : memref<1x8x640xf32, #tpu.memory_space<vmem>>, vector<1x8x384xf32>
      %115 = vector.shape_cast %114 : vector<1x8x384xf32> to vector<8x384xf32>
      %c272 = arith.constant 272 : index
      %c0_122 = arith.constant 0 : index
      %116 = vector.load %arg6[%c272, %c0_122] : memref<384x384xf32, #tpu.memory_space<vmem>>, vector<8x384xf32>
      tpu.vector_store %arg6[%c272, %c0_122], %115 {strides = array<i32>} : memref<384x384xf32, #tpu.memory_space<vmem>>, vector<8x384xf32>,
      %c0_123 = arith.constant 0 : index
      %c0_124 = arith.constant 0 : index
      %c200_125 = arith.constant 200 : index
      %117 = vector.load %arg2[%c0_123, %c0_124, %c200_125] : memref<1x8x640xf32, #tpu.memory_space<vmem>>, vector<1x8x384xf32>
      %118 = vector.shape_cast %117 : vector<1x8x384xf32> to vector<8x384xf32>
      %c280 = arith.constant 280 : index
      %c0_126 = arith.constant 0 : index
      %119 = vector.load %arg6[%c280, %c0_126] : memref<384x384xf32, #tpu.memory_space<vmem>>, vector<8x384xf32>
      tpu.vector_store %arg6[%c280, %c0_126], %118 {strides = array<i32>} : memref<384x384xf32, #tpu.memory_space<vmem>>, vector<8x384xf32>,
      %cst_127 = arith.constant 0.000000e+00 : f32
      %120 = vector.broadcast %cst_127 : f32 to vector<96x384xf32>
      %c288 = arith.constant 288 : index
      %c0_128 = arith.constant 0 : index
      %121 = vector.load %arg6[%c288, %c0_128] : memref<384x384xf32, #tpu.memory_space<vmem>>, vector<96x384xf32>
      tpu.vector_store %arg6[%c288, %c0_128], %120 {strides = array<i32>} : memref<384x384xf32, #tpu.memory_space<vmem>>, vector<96x384xf32>,
    } else {
    }
    %c0 = arith.constant 0 : index
    %c0_1 = arith.constant 0 : index
    %3 = vector.load %arg3[%c0, %c0_1] : memref<128x384xf32, #tpu.memory_space<vmem>>, vector<128x384xf32>
    %c0_2 = arith.constant 0 : index
    %c0_3 = arith.constant 0 : index
    %4 = vector.load %arg6[%c0_2, %c0_3] : memref<384x384xf32, #tpu.memory_space<vmem>>, vector<384x384xf32>
    %cst = arith.constant dense<0.000000e+00> : vector<128x384xf32>
    %5 = tpu.matmul %3, %4, %cst {dimension_numbers = #tpu.dot_dimension_numbers<[1], [0], [0], [1], [0, 0, 1, 1], [], []>} : vector<128x384xf32>, vector<384x384xf32>, vector<128x384xf32> -> vector<128x384xf32>
    %c0_4 = arith.constant 0 : index
    %c0_5 = arith.constant 0 : index
    %6 = vector.load %arg4[%c0_4, %c0_5] : memref<128x1xf32, #tpu.memory_space<vmem>>, vector<128x1xf32>
    %7 = vector.broadcast %6 : vector<128x1xf32> to vector<128x384xf32>
    %8 = arith.addf %5, %7 : vector<128x384xf32>
    %c0_6 = arith.constant 0 : index
    %c0_7 = arith.constant 0 : index
    %c0_8 = arith.constant 0 : index
    %9 = vector.load %arg5[%c0_6, %c0_7, %c0_8] : memref<1x128x384xf32, #tpu.memory_space<vmem>>, vector<1x128x384xf32>
    %10 = vector.shape_cast %9 : vector<1x128x384xf32> to vector<128x384xf32>
    %11 = vector.shape_cast %8 : vector<128x384xf32> to vector<1x128x384xf32>
    tpu.vector_store %arg5[%c0_6, %c0_7, %c0_8], %11 {strides = array<i32>} : memref<1x128x384xf32, #tpu.memory_space<vmem>>, vector<1x128x384xf32>,
    return
  }
  func.func @transform_0(%arg0: i32, %arg1: i32) -> (i32, i32, i32) {
    %c0_i32 = arith.constant 0 : i32
    %c0_i32_0 = arith.constant 0 : i32
    %c0_i32_1 = arith.constant 0 : i32
    return %arg0, %c0_i32, %c0_i32_0 : i32, i32, i32
  }
  func.func @transform_1(%arg0: i32, %arg1: i32) -> (i32, i32) {
    %c0_i32 = arith.constant 0 : i32
    %c0_i32_0 = arith.constant 0 : i32
    return %arg1, %c0_i32 : i32, i32
  }
  func.func @transform_2(%arg0: i32, %arg1: i32) -> (i32, i32) {
    %c0_i32 = arith.constant 0 : i32
    %c0_i32_0 = arith.constant 0 : i32
    return %arg1, %c0_i32 : i32, i32
  }
  func.func @transform_3(%arg0: i32, %arg1: i32) -> (i32, i32, i32) {
    %c0_i32 = arith.constant 0 : i32
    %c0_i32_0 = arith.constant 0 : i32
    return %arg0, %arg1, %c0_i32 : i32, i32, i32
  }
}

</mosaic_0001>

<llo_original>
// kernel: tpu_custom_call.1
$region0: #{tpu_custom_call.1}
  #allocation0 [shape = 'u32[]', space=smem, size = 0x4, offset = 0x4, fixed_abs, tag = 'smem constant byte address 0x4 - core index']
  #allocation1 [shape = 'u32[72,128]{1,0:T(1,128)}', space=vmem, size = 0x9000, scoped, tag = 'internal scratch']
  #allocation2 [shape = 'f32[384,384]{1,0:T(8,128)}', space=vmem, size = 0x90000, scoped, tag = 'scratch operand']
  %s0 = inlined_call_operand.vmem [shape: f32[2,8,640], index: 0, kind: input, shape index: {}]
  %s1 = inlined_call_operand.hbm [shape: f32[128,384], index: 1, kind: input, shape index: {}]
  %s2 = inlined_call_operand.vmem [shape: f32[128,1], index: 2, kind: input, shape index: {}]
  %s3 = inlined_call_operand.hbm [shape: f32[2,128,384], index: 3, kind: output, shape index: {}]
  %s4 = sld [smem:[#allocation0]]
  $region53: #{tpu_custom_call.1} parent=0
    _
  %s6 = ssub.s32 1, %s4
  %s7 = scalar_select 0, %s6, %s4
  $region1: #{tpu_custom_call.1} parent=0
    #allocation3 [shape = 'u8[196608]{0}', space=vmem, size = 0x30000, scoped, tag = 'input window, operand 1, single buffered']
    #allocation4 [shape = 's32[2]{0}', space=sflag, size = 0x8, scoped, tag = 'scoped memory for tpu_custom_call.1']
    #allocation5 [shape = 's32[2]{0}', space=sflag, size = 0x8, scoped, tag = 'scoped memory for tpu_custom_call.1']
    #allocation6 [shape = 'u8[393216]{0}', space=vmem, size = 0x60000, scoped, tag = 'output window, operand 0']
    %8 = vsyncpa [#allocation4], 0
    %9 = vsyncpa [#allocation5], 0
    %s10 = scalar_lea.sflag [#allocation5], 1
    %11 = vsyncpa %s10, 0
    loop: start=0, step=1, limit=4
    $region2: #{tpu_custom_call.1} parent=1 // loop_pre_header
      _
    $region3: #{tpu_custom_call.1} parent=1 // loop_header
      %s13 = sphi 0, %s17
      %p14 = scmp.ge.s32.totalorder %s13, 4
      %s20 = sphi 0, %s32
      %s21 = sphi 0, %s28
      %s22 = sphi 0, %s20
      %s23 = sphi 0, %s21
      %s24 = sphi 0, %s22
      %s25 = sphi 0, %s23
      %s35 = sphi 0, %s37
      %s38 = sphi 0, %s35
      %s39 = sphi 0, %s38
      %s55 = sphi 0, %s39
      %s61 = sphi 0, %s63
      %s64 = sphi 0, %s61
      %s65 = sphi 0, %s64
      %s81 = sphi 0, %s65
      %s87 = sphi 0, %s89
      %s90 = sphi 0, %s87
      %s91 = sphi 0, %s90
      %s107 = sphi 0, %s91
      %s115 = sphi 0, %s117
      %s118 = sphi 0, %s115
      %s119 = sphi 0, %s118
      %s135 = sphi 0, %s119
    $region4: #{tpu_custom_call.1} parent=1 // loop_header_branch
      %16 = sbr.rel (%p14) target = $region8
    $region5: #{tpu_custom_call.1} parent=1 // loop_body
      %s18 = ssub.s32 %s13, 1
      %s19 = ssub.s32 %s13, 2
      %s26 = sadd.s32 1, %s21
      %p27 = scmp.ge.s32.totalorder %s26, 1
      %s28 = scalar_select %p27, 0, %s26
      %s29 = sadd.s32 1, %s20
      %s30 = scalar_select %p27, %s29, %s20
      %p31 = scmp.ge.s32.totalorder %s30, 2
      %s32 = scalar_select %p31, 0, %s30
      %s33 = ssub.s32 %s20, %s32
      %p34 = scmp.eq.s32.totalorder %s33, 0
      %s36 = sadd.s32 %s35, 1
      %s37 = scalar_select %p34, %s35, %s36
      %p40 = pneg %p34
      %p41 = scmp.eq.s32.totalorder %s13, 1
      %p42 = por %p40, %p41
      %p43 = scmp.ne.s32.totalorder %s35, %s38
      %p44 = scmp.eq.s32.totalorder %s13, 0
      %p45 = por %p43, %p44
      %p46 = scmp.ne.s32.totalorder %s35, %s38
      %p47 = scmp.eq.s32.totalorder %s18, 1
      %p48 = por %p46, %p47
      %p49 = scmp.ne.s32.totalorder %s38, %s39
      %p50 = scmp.eq.s32.totalorder %s18, 0
      %p51 = por %p49, %p50
      %p52 = scmp.ne.s32.totalorder %s38, %s39
      %p53 = scmp.eq.s32.totalorder %s19, 1
      %p54 = por %p52, %p53
      %p56 = scmp.ne.s32.totalorder %s39, %s55
      %p57 = scmp.eq.s32.totalorder %s19, 0
      %p58 = por %p56, %p57
      %s59 = ssub.s32 %s21, %s28
      %p60 = scmp.eq.s32.totalorder %s59, 0
      %s62 = sadd.s32 %s61, 1
      %s63 = scalar_select %p60, %s61, %s62
      %p66 = pneg %p60
      %p67 = scmp.eq.s32.totalorder %s13, 1
      %p68 = por %p66, %p67
      %p69 = scmp.ne.s32.totalorder %s61, %s64
      %p70 = scmp.eq.s32.totalorder %s13, 0
      %p71 = por %p69, %p70
      %p72 = scmp.ne.s32.totalorder %s61, %s64
      %p73 = scmp.eq.s32.totalorder %s18, 1
      %p74 = por %p72, %p73
      %p75 = scmp.ne.s32.totalorder %s64, %s65
      %p76 = scmp.eq.s32.totalorder %s18, 0
      %p77 = por %p75, %p76
      %p78 = scmp.ne.s32.totalorder %s64, %s65
      %p79 = scmp.eq.s32.totalorder %s19, 1
      %p80 = por %p78, %p79
      %p82 = scmp.ne.s32.totalorder %s65, %s81
      %p83 = scmp.eq.s32.totalorder %s19, 0
      %p84 = por %p82, %p83
      %s85 = ssub.s32 %s21, %s28
      %p86 = scmp.eq.s32.totalorder %s85, 0
      %s88 = sadd.s32 %s87, 1
      %s89 = scalar_select %p86, %s87, %s88
      %p92 = pneg %p86
      %p93 = scmp.eq.s32.totalorder %s13, 1
      %p94 = por %p92, %p93
      %p95 = scmp.ne.s32.totalorder %s87, %s90
      %p96 = scmp.eq.s32.totalorder %s13, 0
      %p97 = por %p95, %p96
      %p98 = scmp.ne.s32.totalorder %s87, %s90
      %p99 = scmp.eq.s32.totalorder %s18, 1
      %p100 = por %p98, %p99
      %p101 = scmp.ne.s32.totalorder %s90, %s91
      %p102 = scmp.eq.s32.totalorder %s18, 0
      %p103 = por %p101, %p102
      %p104 = scmp.ne.s32.totalorder %s90, %s91
      %p105 = scmp.eq.s32.totalorder %s19, 1
      %p106 = por %p104, %p105
      %p108 = scmp.ne.s32.totalorder %s91, %s107
      %p109 = scmp.eq.s32.totalorder %s19, 0
      %p110 = por %p108, %p109
      %s111 = ssub.s32 %s20, %s32
      %s112 = ssub.s32 %s21, %s28
      %s113 = sor.u32 %s111, %s112
      %p114 = scmp.eq.s32.totalorder %s113, 0
      %s116 = sadd.s32 %s115, 1
      %s117 = scalar_select %p114, %s115, %s116
      %p120 = pneg %p114
      %p121 = scmp.eq.s32.totalorder %s13, 1
      %p122 = por %p120, %p121
      %p123 = scmp.ne.s32.totalorder %s115, %s118
      %p124 = scmp.eq.s32.totalorder %s13, 0
      %p125 = por %p123, %p124
      %p126 = scmp.ne.s32.totalorder %s115, %s118
      %p127 = scmp.eq.s32.totalorder %s18, 1
      %p128 = por %p126, %p127
      %p129 = scmp.ne.s32.totalorder %s118, %s119
      %p130 = scmp.eq.s32.totalorder %s18, 0
      %p131 = por %p129, %p130
      %p132 = scmp.ne.s32.totalorder %s118, %s119
      %p133 = scmp.eq.s32.totalorder %s19, 1
      %p134 = por %p132, %p133
      %p136 = scmp.ne.s32.totalorder %s119, %s135
      %p137 = scmp.eq.s32.totalorder %s19, 0
      %p138 = por %p136, %p137
      %p139 = scmp.le.s32.totalorder 1, %s13
      %p140 = scmp.lt.s32.totalorder %s13, 3
      %p141 = pnand %p139, %p140
      %p142 = pneg %p141
      // Predicated region
      $region9: #{tpu_custom_call.1} parent=5 // pred_check
        _
      $region10: #{tpu_custom_call.1} parent=5 // pred_check_branch
        %144 = sbr.rel (%p141) target = $region12
      $region11: #{tpu_custom_call.1} parent=5 // pred_region
        %s145 = ssub.s32 %s13, 1
        // Predicated region
        $region13: #{tpu_custom_call.1} parent=11 // pred_check
          %p146 = pneg %p77
        $region14: #{tpu_custom_call.1} parent=11 // pred_check_branch
          %148 = sbr.rel (%p146) target = $region16
        $region15: #{tpu_custom_call.1} parent=11 // pred_region
          %s149 = smul.u32 16, %s23
          %151 = vsyncadd [#allocation4], 0
          %s152 = smul.addr %s149, 3
          %s153 = smul.addr %s152, 8
          %s154 = scalar_lea.hbm %s1, %s153
          %s155 = sshll.u32 %s154, 4
          %s156 = int_to_ptr.hbm [resolvable:$true] %s155
          %s157 = sshll.u32 [#allocation3], 4
          %s158 = int_to_ptr.vmem [resolvable:$true] %s157
          %163 = dma.hbm_to_vmem [thread:$0]  %s156, 6144, %s158, [#allocation4], 384, 384, 24
        $region16: #{tpu_custom_call.1} parent=11 // pred_fallthru
          _
        // Predicated region
        $region17: #{tpu_custom_call.1} parent=11 // pred_check
          %p164 = pneg %p103
        $region18: #{tpu_custom_call.1} parent=11 // pred_check_branch
          %166 = sbr.rel (%p164) target = $region20
        $region19: #{tpu_custom_call.1} parent=11 // pred_region
          %s167 = smul.u32 16, %s23
          %p168 = scmp.lt.s32.totalorder %s167, 15
          %s169 = scalar_select %p168, %s167, 15
          %s170 = smul.addr %s169, 8
          %s171 = scalar_lea.vmem %s2, %s170
          %s172 = smul.u32 16, %s23
        $region20: #{tpu_custom_call.1} parent=11 // pred_fallthru
          _
      $region12: #{tpu_custom_call.1} parent=5 // pred_fallthru
        _
      %p173 = scmp.lt.s32.totalorder %s13, 2
      // Predicated region
      $region21: #{tpu_custom_call.1} parent=5 // pred_check
        %p174 = pneg %p173
      $region22: #{tpu_custom_call.1} parent=5 // pred_check_branch
        %176 = sbr.rel (%p174) target = $region24
      $region23: #{tpu_custom_call.1} parent=5 // pred_region
        // Predicated region
        $region25: #{tpu_custom_call.1} parent=23 // pred_check
          %p177 = pneg %p45
        $region26: #{tpu_custom_call.1} parent=23 // pred_check_branch
          %179 = sbr.rel (%p177) target = $region28
        $region27: #{tpu_custom_call.1} parent=23 // pred_region
          %p180 = scmp.lt.s32.totalorder %s20, 1
          %s181 = scalar_select %p180, %s20, 1
          %s182 = smul.addr %s181, 5
          %s183 = smul.addr %s182, 8
          %s184 = scalar_lea.vmem %s0, %s183
        $region28: #{tpu_custom_call.1} parent=23 // pred_fallthru
          _
      $region24: #{tpu_custom_call.1} parent=5 // pred_fallthru
        _
      %p185 = scmp.le.s32.totalorder 1, %s13
      %p186 = scmp.lt.s32.totalorder %s13, 3
      %p187 = pnand %p185, %p186
      %p188 = pneg %p187
      // Predicated region
      $region29: #{tpu_custom_call.1} parent=5 // pred_check
        _
      $region30: #{tpu_custom_call.1} parent=5 // pred_check_branch
        %190 = sbr.rel (%p187) target = $region32
      $region31: #{tpu_custom_call.1} parent=5 // pred_region
        %s191 = ssub.s32 %s13, 1
        // Predicated region
        $region33: #{tpu_custom_call.1} parent=31 // pred_check
          %p192 = pneg %p77
        $region34: #{tpu_custom_call.1} parent=31 // pred_check_branch
          %194 = sbr.rel (%p192) target = $region36
        $region35: #{tpu_custom_call.1} parent=31 // pred_region
          %196 = dma.done [#allocation4], 6144
        $region36: #{tpu_custom_call.1} parent=31 // pred_fallthru
          _
        %p197 = scmp.lt.s32.totalorder %s22, 1
        %s198 = scalar_select %p197, %s22, 1
        %s199 = smul.addr %s198, 5
        %s200 = smul.addr %s199, 8
        %s201 = scalar_lea.vmem %s0, %s200
        %p202 = pneg %p51
        %p203 = pneg %p48
        %p204 = pneg %p77
        %p205 = pneg %p74
        %s206 = smul.u32 16, %s23
        %p207 = scmp.lt.s32.totalorder %s206, 15
        %s208 = scalar_select %p207, %s206, 15
        %s209 = smul.addr %s208, 8
        %s210 = scalar_lea.vmem %s2, %s209
        %p211 = pneg %p103
        %p212 = pneg %p100
        %p213 = pneg %p131
        %p214 = pneg %p128
        %s215 = sand.u32 %s118, 1
        %s216 = scalar_lea.sflag [#allocation5], %s215
        %s217 = sand.u32 %s118, 1
        %s218 = smul.addr %s217, 384
        %s219 = scalar_lea.vmem [#allocation6], %s218
        %p220 = scmp.lt.s32.totalorder %s22, 1
        %s221 = scalar_select %p220, %s22, 1
        %s222 = smul.addr %s221, 5
        %s223 = smul.addr %s222, 8
        %s224 = scalar_lea.vmem %s0, %s223
        %s225 = smul.u32 16, %s23
        %s226 = smul.u32 16, %s23
        %p227 = scmp.lt.s32.totalorder %s226, 15
        %s228 = scalar_select %p227, %s226, 15
        %s229 = smul.addr %s228, 8
        %s230 = scalar_lea.vmem %s2, %s229
        %s231 = smul.u32 16, %s23
        %s232 = smul.u32 16, %s23
        %p233 = scmp.eq.s32.totalorder %s23, 0
        // Predicated region
        $region37: #{tpu_custom_call.1} parent=31 // pred_check
          %p234 = pneg %p233
        $region38: #{tpu_custom_call.1} parent=31 // pred_check_branch
          %236 = sbr.rel (%p234) target = $region40
        $region39: #{tpu_custom_call.1} parent=31 // pred_region
          %v237 = vld [vmem:[%s224] sm:$0xff]
          %v238 = vld [vmem:[%s224 + $0x8] sm:$0xff]
          %v239 = vld [vmem:[%s224 + $0x10] sm:$0xff]
          %v240 = vld [vmem:[%s224 + $0x18] sm:$0xff]
          %245 = vrot.lane.b32.xlu0 %v237, 53
          %v246 = vpop.permute.xlu0 %245
          %247 = vrot.lane.b32.xlu0 %v238, 53
          %v248 = vpop.permute.xlu0 %247
          %249 = vrot.lane.b32.xlu0 %v239, 53
          %v250 = vpop.permute.xlu0 %249
          %251 = vrot.lane.b32.xlu0 %v240, 53
          %v252 = vpop.permute.xlu0 %251
          %vm253 = vcmask 433152
          %v254 = vsel %vm253, %v246, %v248
          %v255 = vsel %vm253, %v248, %v250
          %v256 = vsel %vm253, %v250, %v252
          %260 = vst [vmem:[#allocation2] sm:$0xff] %v254
          %261 = vst [vmem:[#allocation2 + $0x8] sm:$0xff] %v255
          %262 = vst [vmem:[#allocation2 + $0x10] sm:$0xff] %v256
          %v263 = vld [vmem:[%s224] sm:$0xff]
          %v264 = vld [vmem:[%s224 + $0x8] sm:$0xff]
          %v265 = vld [vmem:[%s224 + $0x10] sm:$0xff]
          %v266 = vld [vmem:[%s224 + $0x18] sm:$0xff]
          %271 = vrot.lane.b32.xlu0 %v263, 52
          %v272 = vpop.permute.xlu0 %271
          %273 = vrot.lane.b32.xlu0 %v264, 52
          %v274 = vpop.permute.xlu0 %273
          %275 = vrot.lane.b32.xlu0 %v265, 52
          %v276 = vpop.permute.xlu0 %275
          %277 = vrot.lane.b32.xlu0 %v266, 52
          %v278 = vpop.permute.xlu0 %277
          %vm279 = vcmask 424960
          %v280 = vsel %vm279, %v272, %v274
          %v281 = vsel %vm279, %v274, %v276
          %v282 = vsel %vm279, %v276, %v278
          %286 = vst [vmem:[#allocation2 + $0x18] sm:$0xff] %v280
          %287 = vst [vmem:[#allocation2 + $0x20] sm:$0xff] %v281
          %288 = vst [vmem:[#allocation2 + $0x28] sm:$0xff] %v282
          %v289 = vld [vmem:[%s224] sm:$0xff]
          %v290 = vld [vmem:[%s224 + $0x8] sm:$0xff]
          %v291 = vld [vmem:[%s224 + $0x10] sm:$0xff]
          %v292 = vld [vmem:[%s224 + $0x18] sm:$0xff]
          %297 = vrot.lane.b32.xlu0 %v289, 51
          %v298 = vpop.permute.xlu0 %297
          %299 = vrot.lane.b32.xlu0 %v290, 51
          %v300 = vpop.permute.xlu0 %299
          %301 = vrot.lane.b32.xlu0 %v291, 51
          %v302 = vpop.permute.xlu0 %301
          %303 = vrot.lane.b32.xlu0 %v292, 51
          %v304 = vpop.permute.xlu0 %303
          %vm305 = vcmask 416768
          %v306 = vsel %vm305, %v298, %v300
          %v307 = vsel %vm305, %v300, %v302
          %v308 = vsel %vm305, %v302, %v304
          %312 = vst [vmem:[#allocation2 + $0x30] sm:$0xff] %v306
          %313 = vst [vmem:[#allocation2 + $0x38] sm:$0xff] %v307
          %314 = vst [vmem:[#allocation2 + $0x40] sm:$0xff] %v308
          %v315 = vld [vmem:[%s224] sm:$0xff]
          %v316 = vld [vmem:[%s224 + $0x8] sm:$0xff]
          %v317 = vld [vmem:[%s224 + $0x10] sm:$0xff]
          %v318 = vld [vmem:[%s224 + $0x18] sm:$0xff]
          %323 = vrot.lane.b32.xlu0 %v315, 29
          %v324 = vpop.permute.xlu0 %323
          %325 = vrot.lane.b32.xlu0 %v316, 29
          %v326 = vpop.permute.xlu0 %325
          %327 = vrot.lane.b32.xlu0 %v317, 29
          %v328 = vpop.permute.xlu0 %327
          %329 = vrot.lane.b32.xlu0 %v318, 29
          %v330 = vpop.permute.xlu0 %329
          %vm331 = vcmask 236544
          %v332 = vsel %vm331, %v324, %v326
          %v333 = vsel %vm331, %v326, %v328
          %v334 = vsel %vm331, %v328, %v330
          %338 = vst [vmem:[#allocation2 + $0x48] sm:$0xff] %v332
          %339 = vst [vmem:[#allocation2 + $0x50] sm:$0xff] %v333
          %340 = vst [vmem:[#allocation2 + $0x58] sm:$0xff] %v334
          %v341 = vld [vmem:[%s224] sm:$0xff]
          %v342 = vld [vmem:[%s224 + $0x8] sm:$0xff]
          %v343 = vld [vmem:[%s224 + $0x10] sm:$0xff]
          %v344 = vld [vmem:[%s224 + $0x18] sm:$0xff]
          %349 = vrot.lane.b32.xlu0 %v341, 28
          %v350 = vpop.permute.xlu0 %349
          %351 = vrot.lane.b32.xlu0 %v342, 28
          %v352 = vpop.permute.xlu0 %351
          %353 = vrot.lane.b32.xlu0 %v343, 28
          %v354 = vpop.permute.xlu0 %353
          %355 = vrot.lane.b32.xlu0 %v344, 28
          %v356 = vpop.permute.xlu0 %355
          %vm357 = vcmask 228352
          %v358 = vsel %vm357, %v350, %v352
          %v359 = vsel %vm357, %v352, %v354
          %v360 = vsel %vm357, %v354, %v356
          %364 = vst [vmem:[#allocation2 + $0x60] sm:$0xff] %v358
          %365 = vst [vmem:[#allocation2 + $0x68] sm:$0xff] %v359
          %366 = vst [vmem:[#allocation2 + $0x70] sm:$0xff] %v360
          %v367 = vld [vmem:[%s224] sm:$0xff]
          %v368 = vld [vmem:[%s224 + $0x8] sm:$0xff]
          %v369 = vld [vmem:[%s224 + $0x10] sm:$0xff]
          %v370 = vld [vmem:[%s224 + $0x18] sm:$0xff]
          %375 = vrot.lane.b32.xlu0 %v367, 27
          %v376 = vpop.permute.xlu0 %375
          %377 = vrot.lane.b32.xlu0 %v368, 27
          %v378 = vpop.permute.xlu0 %377
          %379 = vrot.lane.b32.xlu0 %v369, 27
          %v380 = vpop.permute.xlu0 %379
          %381 = vrot.lane.b32.xlu0 %v370, 27
          %v382 = vpop.permute.xlu0 %381
          %vm383 = vcmask 220160
          %v384 = vsel %vm383, %v376, %v378
          %v385 = vsel %vm383, %v378, %v380
          %v386 = vsel %vm383, %v380, %v382
          %390 = vst [vmem:[#allocation2 + $0x78] sm:$0xff] %v384
          %391 = vst [vmem:[#allocation2 + $0x80] sm:$0xff] %v385
          %392 = vst [vmem:[#allocation2 + $0x88] sm:$0xff] %v386
          %v393 = vld [vmem:[%s224] sm:$0xff]
          %v394 = vld [vmem:[%s224 + $0x8] sm:$0xff]
          %v395 = vld [vmem:[%s224 + $0x10] sm:$0xff]
          %v396 = vld [vmem:[%s224 + $0x18] sm:$0xff]
          %401 = vrot.lane.b32.xlu0 %v393, 5
          %v402 = vpop.permute.xlu0 %401
          %403 = vrot.lane.b32.xlu0 %v394, 5
          %v404 = vpop.permute.xlu0 %403
          %405 = vrot.lane.b32.xlu0 %v395, 5
          %v406 = vpop.permute.xlu0 %405
          %407 = vrot.lane.b32.xlu0 %v396, 5
          %v408 = vpop.permute.xlu0 %407
          %vm409 = vcmask 39936
          %v410 = vsel %vm409, %v402, %v404
          %v411 = vsel %vm409, %v404, %v406
          %v412 = vsel %vm409, %v406, %v408
          %416 = vst [vmem:[#allocation2 + $0x90] sm:$0xff] %v410
          %417 = vst [vmem:[#allocation2 + $0x98] sm:$0xff] %v411
          %418 = vst [vmem:[#allocation2 + $0xa0] sm:$0xff] %v412
          %v419 = vld [vmem:[%s224] sm:$0xff]
          %v420 = vld [vmem:[%s224 + $0x8] sm:$0xff]
          %v421 = vld [vmem:[%s224 + $0x10] sm:$0xff]
          %v422 = vld [vmem:[%s224 + $0x18] sm:$0xff]
          %427 = vrot.lane.b32.xlu0 %v419, 4
          %v428 = vpop.permute.xlu0 %427
          %429 = vrot.lane.b32.xlu0 %v420, 4
          %v430 = vpop.permute.xlu0 %429
          %431 = vrot.lane.b32.xlu0 %v421, 4
          %v432 = vpop.permute.xlu0 %431
          %433 = vrot.lane.b32.xlu0 %v422, 4
          %v434 = vpop.permute.xlu0 %433
          %vm435 = vcmask 31744
          %v436 = vsel %vm435, %v428, %v430
          %v437 = vsel %vm435, %v430, %v432
          %v438 = vsel %vm435, %v432, %v434
          %442 = vst [vmem:[#allocation2 + $0xa8] sm:$0xff] %v436
          %443 = vst [vmem:[#allocation2 + $0xb0] sm:$0xff] %v437
          %444 = vst [vmem:[#allocation2 + $0xb8] sm:$0xff] %v438
          %v445 = vld [vmem:[%s224] sm:$0xff]
          %v446 = vld [vmem:[%s224 + $0x8] sm:$0xff]
          %v447 = vld [vmem:[%s224 + $0x10] sm:$0xff]
          %v448 = vld [vmem:[%s224 + $0x18] sm:$0xff]
          %453 = vrot.lane.b32.xlu0 %v445, 3
          %v454 = vpop.permute.xlu0 %453
          %455 = vrot.lane.b32.xlu0 %v446, 3
          %v456 = vpop.permute.xlu0 %455
          %457 = vrot.lane.b32.xlu0 %v447, 3
          %v458 = vpop.permute.xlu0 %457
          %459 = vrot.lane.b32.xlu0 %v448, 3
          %v460 = vpop.permute.xlu0 %459
          %vm461 = vcmask 23552
          %v462 = vsel %vm461, %v454, %v456
          %v463 = vsel %vm461, %v456, %v458
          %v464 = vsel %vm461, %v458, %v460
          %468 = vst [vmem:[#allocation2 + $0xc0] sm:$0xff] %v462
          %469 = vst [vmem:[#allocation2 + $0xc8] sm:$0xff] %v463
          %470 = vst [vmem:[#allocation2 + $0xd0] sm:$0xff] %v464
          %v471 = vld [vmem:[%s224] sm:$0xff]
          %v472 = vld [vmem:[%s224 + $0x8] sm:$0xff]
          %v473 = vld [vmem:[%s224 + $0x10] sm:$0xff]
          %v474 = vld [vmem:[%s224 + $0x18] sm:$0xff]
          %479 = vrot.lane.b32.xlu0 %v471, 78
          %v480 = vpop.permute.xlu0 %479
          %481 = vrot.lane.b32.xlu0 %v472, 78
          %v482 = vpop.permute.xlu0 %481
          %483 = vrot.lane.b32.xlu0 %v473, 78
          %v484 = vpop.permute.xlu0 %483
          %485 = vrot.lane.b32.xlu0 %v474, 78
          %v486 = vpop.permute.xlu0 %485
          %vm487 = vcmask 637952
          %v488 = vsel %vm487, %v480, %v482
          %v489 = vsel %vm487, %v482, %v484
          %v490 = vsel %vm487, %v484, %v486
          %494 = vst [vmem:[#allocation2 + $0xd8] sm:$0xff] %v488
          %495 = vst [vmem:[#allocation2 + $0xe0] sm:$0xff] %v489
          %496 = vst [vmem:[#allocation2 + $0xe8] sm:$0xff] %v490
          %v497 = vld [vmem:[%s224] sm:$0xff]
          %v498 = vld [vmem:[%s224 + $0x8] sm:$0xff]
          %v499 = vld [vmem:[%s224 + $0x10] sm:$0xff]
          %v500 = vld [vmem:[%s224 + $0x18] sm:$0xff]
          %505 = vrot.lane.b32.xlu0 %v497, 76
          %v506 = vpop.permute.xlu0 %505
          %507 = vrot.lane.b32.xlu0 %v498, 76
          %v508 = vpop.permute.xlu0 %507
          %509 = vrot.lane.b32.xlu0 %v499, 76
          %v510 = vpop.permute.xlu0 %509
          %511 = vrot.lane.b32.xlu0 %v500, 76
          %v512 = vpop.permute.xlu0 %511
          %vm513 = vcmask 621568
          %v514 = vsel %vm513, %v506, %v508
          %v515 = vsel %vm513, %v508, %v510
          %v516 = vsel %vm513, %v510, %v512
          %520 = vst [vmem:[#allocation2 + $0xf0] sm:$0xff] %v514
          %521 = vst [vmem:[#allocation2 + $0xf8] sm:$0xff] %v515
          %522 = vst [vmem:[#allocation2 + $0x100] sm:$0xff] %v516
          %v523 = vld [vmem:[%s224] sm:$0xff]
          %v524 = vld [vmem:[%s224 + $0x8] sm:$0xff]
          %v525 = vld [vmem:[%s224 + $0x10] sm:$0xff]
          %v526 = vld [vmem:[%s224 + $0x18] sm:$0xff]
          %531 = vrot.lane.b32.xlu0 %v523, 74
          %v532 = vpop.permute.xlu0 %531
          %533 = vrot.lane.b32.xlu0 %v524, 74
          %v534 = vpop.permute.xlu0 %533
          %535 = vrot.lane.b32.xlu0 %v525, 74
          %v536 = vpop.permute.xlu0 %535
          %537 = vrot.lane.b32.xlu0 %v526, 74
          %v538 = vpop.permute.xlu0 %537
          %vm539 = vcmask 605184
          %v540 = vsel %vm539, %v532, %v534
          %v541 = vsel %vm539, %v534, %v536
          %v542 = vsel %vm539, %v536, %v538
          %546 = vst [vmem:[#allocation2 + $0x108] sm:$0xff] %v540
          %547 = vst [vmem:[#allocation2 + $0x110] sm:$0xff] %v541
          %548 = vst [vmem:[#allocation2 + $0x118] sm:$0xff] %v542
          %v549 = vld [vmem:[%s224] sm:$0xff]
          %v550 = vld [vmem:[%s224 + $0x8] sm:$0xff]
          %v551 = vld [vmem:[%s224 + $0x10] sm:$0xff]
          %v552 = vld [vmem:[%s224 + $0x18] sm:$0xff]
          %557 = vrot.lane.b32.xlu0 %v549, 30
          %v558 = vpop.permute.xlu0 %557
          %559 = vrot.lane.b32.xlu0 %v550, 30
          %v560 = vpop.permute.xlu0 %559
          %561 = vrot.lane.b32.xlu0 %v551, 30
          %v562 = vpop.permute.xlu0 %561
          %563 = vrot.lane.b32.xlu0 %v552, 30
          %v564 = vpop.permute.xlu0 %563
          %vm565 = vcmask 244736
          %v566 = vsel %vm565, %v558, %v560
          %v567 = vsel %vm565, %v560, %v562
          %v568 = vsel %vm565, %v562, %v564
          %572 = vst [vmem:[#allocation2 + $0x120] sm:$0xff] %v566
          %573 = vst [vmem:[#allocation2 + $0x128] sm:$0xff] %v567
          %574 = vst [vmem:[#allocation2 + $0x130] sm:$0xff] %v568
          %v575 = vld [vmem:[%s224] sm:$0xff]
          %v576 = vld [vmem:[%s224 + $0x8] sm:$0xff]
          %v577 = vld [vmem:[%s224 + $0x10] sm:$0xff]
          %v578 = vld [vmem:[%s224 + $0x18] sm:$0xff]
          %583 = vrot.lane.b32.xlu0 %v575, 28
          %v584 = vpop.permute.xlu0 %583
          %585 = vrot.lane.b32.xlu0 %v576, 28
          %v586 = vpop.permute.xlu0 %585
          %587 = vrot.lane.b32.xlu0 %v577, 28
          %v588 = vpop.permute.xlu0 %587
          %589 = vrot.lane.b32.xlu0 %v578, 28
          %v590 = vpop.permute.xlu0 %589
          %v591 = vsel %vm357, %v584, %v586
          %v592 = vsel %vm357, %v586, %v588
          %v593 = vsel %vm357, %v588, %v590
          %597 = vst [vmem:[#allocation2 + $0x138] sm:$0xff] %v591
          %598 = vst [vmem:[#allocation2 + $0x140] sm:$0xff] %v592
          %599 = vst [vmem:[#allocation2 + $0x148] sm:$0xff] %v593
          %v600 = vld [vmem:[%s224] sm:$0xff]
          %v601 = vld [vmem:[%s224 + $0x8] sm:$0xff]
          %v602 = vld [vmem:[%s224 + $0x10] sm:$0xff]
          %v603 = vld [vmem:[%s224 + $0x18] sm:$0xff]
          %608 = vrot.lane.b32.xlu0 %v600, 26
          %v609 = vpop.permute.xlu0 %608
          %610 = vrot.lane.b32.xlu0 %v601, 26
          %v611 = vpop.permute.xlu0 %610
          %612 = vrot.lane.b32.xlu0 %v602, 26
          %v613 = vpop.permute.xlu0 %612
          %614 = vrot.lane.b32.xlu0 %v603, 26
          %v615 = vpop.permute.xlu0 %614
          %vm616 = vcmask 211968
          %v617 = vsel %vm616, %v609, %v611
          %v618 = vsel %vm616, %v611, %v613
          %v619 = vsel %vm616, %v613, %v615
          %623 = vst [vmem:[#allocation2 + $0x150] sm:$0xff] %v617
          %624 = vst [vmem:[#allocation2 + $0x158] sm:$0xff] %v618
          %625 = vst [vmem:[#allocation2 + $0x160] sm:$0xff] %v619
          %v626 = vld [vmem:[%s224 + $0x8] sm:$0xff]
          %v627 = vld [vmem:[%s224 + $0x10] sm:$0xff]
          %v628 = vld [vmem:[%s224 + $0x18] sm:$0xff]
          %v629 = vld [vmem:[%s224 + $0x20] sm:$0xff]
          %634 = vrot.lane.b32.xlu0 %v626, 110
          %v635 = vpop.permute.xlu0 %634
          %636 = vrot.lane.b32.xlu0 %v627, 110
          %v637 = vpop.permute.xlu0 %636
          %638 = vrot.lane.b32.xlu0 %v628, 110
          %v639 = vpop.permute.xlu0 %638
          %640 = vrot.lane.b32.xlu0 %v629, 110
          %v641 = vpop.permute.xlu0 %640
          %vm642 = vcmask 900096
          %v643 = vsel %vm642, %v635, %v637
          %v644 = vsel %vm642, %v637, %v639
          %v645 = vsel %vm642, %v639, %v641
          %649 = vst [vmem:[#allocation2 + $0x168] sm:$0xff] %v643
          %650 = vst [vmem:[#allocation2 + $0x170] sm:$0xff] %v644
          %651 = vst [vmem:[#allocation2 + $0x178] sm:$0xff] %v645
          %v652 = vld [vmem:[%s224 + $0x8] sm:$0xff]
          %v653 = vld [vmem:[%s224 + $0x10] sm:$0xff]
          %v654 = vld [vmem:[%s224 + $0x18] sm:$0xff]
          %v655 = vld [vmem:[%s224 + $0x20] sm:$0xff]
          %660 = vrot.lane.b32.xlu0 %v652, 108
          %v661 = vpop.permute.xlu0 %660
          %662 = vrot.lane.b32.xlu0 %v653, 108
          %v663 = vpop.permute.xlu0 %662
          %664 = vrot.lane.b32.xlu0 %v654, 108
          %v665 = vpop.permute.xlu0 %664
          %666 = vrot.lane.b32.xlu0 %v655, 108
          %v667 = vpop.permute.xlu0 %666
          %vm668 = vcmask 883712
          %v669 = vsel %vm668, %v661, %v663
          %v670 = vsel %vm668, %v663, %v665
          %v671 = vsel %vm668, %v665, %v667
          %675 = vst [vmem:[#allocation2 + $0x180] sm:$0xff] %v669
          %676 = vst [vmem:[#allocation2 + $0x188] sm:$0xff] %v670
          %677 = vst [vmem:[#allocation2 + $0x190] sm:$0xff] %v671
          %v678 = vld [vmem:[%s224 + $0x8] sm:$0xff]
          %v679 = vld [vmem:[%s224 + $0x10] sm:$0xff]
          %v680 = vld [vmem:[%s224 + $0x18] sm:$0xff]
          %v681 = vld [vmem:[%s224 + $0x20] sm:$0xff]
          %686 = vrot.lane.b32.xlu0 %v678, 106
          %v687 = vpop.permute.xlu0 %686
          %688 = vrot.lane.b32.xlu0 %v679, 106
          %v689 = vpop.permute.xlu0 %688
          %690 = vrot.lane.b32.xlu0 %v680, 106
          %v691 = vpop.permute.xlu0 %690
          %692 = vrot.lane.b32.xlu0 %v681, 106
          %v693 = vpop.permute.xlu0 %692
          %vm694 = vcmask 867328
          %v695 = vsel %vm694, %v687, %v689
          %v696 = vsel %vm694, %v689, %v691
          %v697 = vsel %vm694, %v691, %v693
          %701 = vst [vmem:[#allocation2 + $0x198] sm:$0xff] %v695
          %702 = vst [vmem:[#allocation2 + $0x1a0] sm:$0xff] %v696
          %703 = vst [vmem:[#allocation2 + $0x1a8] sm:$0xff] %v697
          %v704 = vld [vmem:[%s224] sm:$0xff]
          %v705 = vld [vmem:[%s224 + $0x8] sm:$0xff]
          %v706 = vld [vmem:[%s224 + $0x10] sm:$0xff]
          %v707 = vld [vmem:[%s224 + $0x18] sm:$0xff]
          %712 = vrot.lane.b32.xlu0 %v704, 103
          %v713 = vpop.permute.xlu0 %712
          %714 = vrot.lane.b32.xlu0 %v705, 103
          %v715 = vpop.permute.xlu0 %714
          %716 = vrot.lane.b32.xlu0 %v706, 103
          %v717 = vpop.permute.xlu0 %716
          %718 = vrot.lane.b32.xlu0 %v707, 103
          %v719 = vpop.permute.xlu0 %718
          %vm720 = vcmask 842752
          %v721 = vsel %vm720, %v713, %v715
          %v722 = vsel %vm720, %v715, %v717
          %v723 = vsel %vm720, %v717, %v719
          %727 = vst [vmem:[#allocation2 + $0x1b0] sm:$0xff] %v721
          %728 = vst [vmem:[#allocation2 + $0x1b8] sm:$0xff] %v722
          %729 = vst [vmem:[#allocation2 + $0x1c0] sm:$0xff] %v723
          %v730 = vld [vmem:[%s224] sm:$0xff]
          %v731 = vld [vmem:[%s224 + $0x8] sm:$0xff]
          %v732 = vld [vmem:[%s224 + $0x10] sm:$0xff]
          %v733 = vld [vmem:[%s224 + $0x18] sm:$0xff]
          %738 = vrot.lane.b32.xlu0 %v730, 100
          %v739 = vpop.permute.xlu0 %738
          %740 = vrot.lane.b32.xlu0 %v731, 100
          %v741 = vpop.permute.xlu0 %740
          %742 = vrot.lane.b32.xlu0 %v732, 100
          %v743 = vpop.permute.xlu0 %742
          %744 = vrot.lane.b32.xlu0 %v733, 100
          %v745 = vpop.permute.xlu0 %744
          %vm746 = vcmask 818176
          %v747 = vsel %vm746, %v739, %v741
          %v748 = vsel %vm746, %v741, %v743
          %v749 = vsel %vm746, %v743, %v745
          %753 = vst [vmem:[#allocation2 + $0x1c8] sm:$0xff] %v747
          %754 = vst [vmem:[#allocation2 + $0x1d0] sm:$0xff] %v748
          %755 = vst [vmem:[#allocation2 + $0x1d8] sm:$0xff] %v749
          %v756 = vld [vmem:[%s224] sm:$0xff]
          %v757 = vld [vmem:[%s224 + $0x8] sm:$0xff]
          %v758 = vld [vmem:[%s224 + $0x10] sm:$0xff]
          %v759 = vld [vmem:[%s224 + $0x18] sm:$0xff]
          %764 = vrot.lane.b32.xlu0 %v756, 97
          %v765 = vpop.permute.xlu0 %764
          %766 = vrot.lane.b32.xlu0 %v757, 97
          %v767 = vpop.permute.xlu0 %766
          %768 = vrot.lane.b32.xlu0 %v758, 97
          %v769 = vpop.permute.xlu0 %768
          %770 = vrot.lane.b32.xlu0 %v759, 97
          %v771 = vpop.permute.xlu0 %770
          %vm772 = vcmask 793600
          %v773 = vsel %vm772, %v765, %v767
          %v774 = vsel %vm772, %v767, %v769
          %v775 = vsel %vm772, %v769, %v771
          %779 = vst [vmem:[#allocation2 + $0x1e0] sm:$0xff] %v773
          %780 = vst [vmem:[#allocation2 + $0x1e8] sm:$0xff] %v774
          %781 = vst [vmem:[#allocation2 + $0x1f0] sm:$0xff] %v775
          %v782 = vld [vmem:[%s224] sm:$0xff]
          %v783 = vld [vmem:[%s224 + $0x8] sm:$0xff]
          %v784 = vld [vmem:[%s224 + $0x10] sm:$0xff]
          %v785 = vld [vmem:[%s224 + $0x18] sm:$0xff]
          %790 = vrot.lane.b32.xlu0 %v782, 31
          %v791 = vpop.permute.xlu0 %790
          %792 = vrot.lane.b32.xlu0 %v783, 31
          %v793 = vpop.permute.xlu0 %792
          %794 = vrot.lane.b32.xlu0 %v784, 31
          %v795 = vpop.permute.xlu0 %794
          %796 = vrot.lane.b32.xlu0 %v785, 31
          %v797 = vpop.permute.xlu0 %796
          %vm798 = vcmask 252928
          %v799 = vsel %vm798, %v791, %v793
          %v800 = vsel %vm798, %v793, %v795
          %v801 = vsel %vm798, %v795, %v797
          %805 = vst [vmem:[#allocation2 + $0x1f8] sm:$0xff] %v799
          %806 = vst [vmem:[#allocation2 + $0x200] sm:$0xff] %v800
          %807 = vst [vmem:[#allocation2 + $0x208] sm:$0xff] %v801
          %v808 = vld [vmem:[%s224] sm:$0xff]
          %v809 = vld [vmem:[%s224 + $0x8] sm:$0xff]
          %v810 = vld [vmem:[%s224 + $0x10] sm:$0xff]
          %v811 = vld [vmem:[%s224 + $0x18] sm:$0xff]
          %816 = vrot.lane.b32.xlu0 %v808, 28
          %v817 = vpop.permute.xlu0 %816
          %818 = vrot.lane.b32.xlu0 %v809, 28
          %v819 = vpop.permute.xlu0 %818
          %820 = vrot.lane.b32.xlu0 %v810, 28
          %v821 = vpop.permute.xlu0 %820
          %822 = vrot.lane.b32.xlu0 %v811, 28
          %v823 = vpop.permute.xlu0 %822
          %v824 = vsel %vm357, %v817, %v819
          %v825 = vsel %vm357, %v819, %v821
          %v826 = vsel %vm357, %v821, %v823
          %830 = vst [vmem:[#allocation2 + $0x210] sm:$0xff] %v824
          %831 = vst [vmem:[#allocation2 + $0x218] sm:$0xff] %v825
          %832 = vst [vmem:[#allocation2 + $0x220] sm:$0xff] %v826
          %v833 = vld [vmem:[%s224] sm:$0xff]
          %v834 = vld [vmem:[%s224 + $0x8] sm:$0xff]
          %v835 = vld [vmem:[%s224 + $0x10] sm:$0xff]
          %v836 = vld [vmem:[%s224 + $0x18] sm:$0xff]
          %841 = vrot.lane.b32.xlu0 %v833, 25
          %v842 = vpop.permute.xlu0 %841
          %843 = vrot.lane.b32.xlu0 %v834, 25
          %v844 = vpop.permute.xlu0 %843
          %845 = vrot.lane.b32.xlu0 %v835, 25
          %v846 = vpop.permute.xlu0 %845
          %847 = vrot.lane.b32.xlu0 %v836, 25
          %v848 = vpop.permute.xlu0 %847
          %vm849 = vcmask 203776
          %v850 = vsel %vm849, %v842, %v844
          %v851 = vsel %vm849, %v844, %v846
          %v852 = vsel %vm849, %v846, %v848
          %856 = vst [vmem:[#allocation2 + $0x228] sm:$0xff] %v850
          %857 = vst [vmem:[#allocation2 + $0x230] sm:$0xff] %v851
          %858 = vst [vmem:[#allocation2 + $0x238] sm:$0xff] %v852
          %v859 = vld [vmem:[%s224 + $0x8] sm:$0xff]
          %v860 = vld [vmem:[%s224 + $0x10] sm:$0xff]
          %v861 = vld [vmem:[%s224 + $0x18] sm:$0xff]
          %v862 = vld [vmem:[%s224 + $0x20] sm:$0xff]
          %867 = vrot.lane.b32.xlu0 %v859, 87
          %v868 = vpop.permute.xlu0 %867
          %869 = vrot.lane.b32.xlu0 %v860, 87
          %v870 = vpop.permute.xlu0 %869
          %871 = vrot.lane.b32.xlu0 %v861, 87
          %v872 = vpop.permute.xlu0 %871
          %873 = vrot.lane.b32.xlu0 %v862, 87
          %v874 = vpop.permute.xlu0 %873
          %vm875 = vcmask 711680
          %v876 = vsel %vm875, %v868, %v870
          %v877 = vsel %vm875, %v870, %v872
          %v878 = vsel %vm875, %v872, %v874
          %882 = vst [vmem:[#allocation2 + $0x240] sm:$0xff] %v876
          %883 = vst [vmem:[#allocation2 + $0x248] sm:$0xff] %v877
          %884 = vst [vmem:[#allocation2 + $0x250] sm:$0xff] %v878
          %v885 = vld [vmem:[%s224 + $0x8] sm:$0xff]
          %v886 = vld [vmem:[%s224 + $0x10] sm:$0xff]
          %v887 = vld [vmem:[%s224 + $0x18] sm:$0xff]
          %v888 = vld [vmem:[%s224 + $0x20] sm:$0xff]
          %893 = vrot.lane.b32.xlu0 %v885, 84
          %v894 = vpop.permute.xlu0 %893
          %895 = vrot.lane.b32.xlu0 %v886, 84
          %v896 = vpop.permute.xlu0 %895
          %897 = vrot.lane.b32.xlu0 %v887, 84
          %v898 = vpop.permute.xlu0 %897
          %899 = vrot.lane.b32.xlu0 %v888, 84
          %v900 = vpop.permute.xlu0 %899
          %vm901 = vcmask 687104
          %v902 = vsel %vm901, %v894, %v896
          %v903 = vsel %vm901, %v896, %v898
          %v904 = vsel %vm901, %v898, %v900
          %908 = vst [vmem:[#allocation2 + $0x258] sm:$0xff] %v902
          %909 = vst [vmem:[#allocation2 + $0x260] sm:$0xff] %v903
          %910 = vst [vmem:[#allocation2 + $0x268] sm:$0xff] %v904
          %v911 = vld [vmem:[%s224 + $0x8] sm:$0xff]
          %v912 = vld [vmem:[%s224 + $0x10] sm:$0xff]
          %v913 = vld [vmem:[%s224 + $0x18] sm:$0xff]
          %v914 = vld [vmem:[%s224 + $0x20] sm:$0xff]
          %919 = vrot.lane.b32.xlu0 %v911, 81
          %v920 = vpop.permute.xlu0 %919
          %921 = vrot.lane.b32.xlu0 %v912, 81
          %v922 = vpop.permute.xlu0 %921
          %923 = vrot.lane.b32.xlu0 %v913, 81
          %v924 = vpop.permute.xlu0 %923
          %925 = vrot.lane.b32.xlu0 %v914, 81
          %v926 = vpop.permute.xlu0 %925
          %vm927 = vcmask 662528
          %v928 = vsel %vm927, %v920, %v922
          %v929 = vsel %vm927, %v922, %v924
          %v930 = vsel %vm927, %v924, %v926
          %934 = vst [vmem:[#allocation2 + $0x270] sm:$0xff] %v928
          %935 = vst [vmem:[#allocation2 + $0x278] sm:$0xff] %v929
          %936 = vst [vmem:[#allocation2 + $0x280] sm:$0xff] %v930
          %v937 = vld [vmem:[%s224] sm:$0xff]
          %v938 = vld [vmem:[%s224 + $0x8] sm:$0xff]
          %v939 = vld [vmem:[%s224 + $0x10] sm:$0xff]
          %940 = vst [vmem:[#allocation2 + $0x288] sm:$0xff] %v937
          %941 = vst [vmem:[#allocation2 + $0x290] sm:$0xff] %v938
          %942 = vst [vmem:[#allocation2 + $0x298] sm:$0xff] %v939
          %v943 = vld [vmem:[%s224] sm:$0xff]
          %v944 = vld [vmem:[%s224 + $0x8] sm:$0xff]
          %v945 = vld [vmem:[%s224 + $0x10] sm:$0xff]
          %v946 = vld [vmem:[%s224 + $0x18] sm:$0xff]
          %951 = vrot.lane.b32.xlu0 %v943, 124
          %v952 = vpop.permute.xlu0 %951
          %953 = vrot.lane.b32.xlu0 %v944, 124
          %v954 = vpop.permute.xlu0 %953
          %955 = vrot.lane.b32.xlu0 %v945, 124
          %v956 = vpop.permute.xlu0 %955
          %957 = vrot.lane.b32.xlu0 %v946, 124
          %v958 = vpop.permute.xlu0 %957
          %vm959 = vcmask 1014784
          %v960 = vsel %vm959, %v952, %v954
          %v961 = vsel %vm959, %v954, %v956
          %v962 = vsel %vm959, %v956, %v958
          %966 = vst [vmem:[#allocation2 + $0x2a0] sm:$0xff] %v960
          %967 = vst [vmem:[#allocation2 + $0x2a8] sm:$0xff] %v961
          %968 = vst [vmem:[#allocation2 + $0x2b0] sm:$0xff] %v962
          %v969 = vld [vmem:[%s224] sm:$0xff]
          %v970 = vld [vmem:[%s224 + $0x8] sm:$0xff]
          %v971 = vld [vmem:[%s224 + $0x10] sm:$0xff]
          %v972 = vld [vmem:[%s224 + $0x18] sm:$0xff]
          %977 = vrot.lane.b32.xlu0 %v969, 120
          %v978 = vpop.permute.xlu0 %977
          %979 = vrot.lane.b32.xlu0 %v970, 120
          %v980 = vpop.permute.xlu0 %979
          %981 = vrot.lane.b32.xlu0 %v971, 120
          %v982 = vpop.permute.xlu0 %981
          %983 = vrot.lane.b32.xlu0 %v972, 120
          %v984 = vpop.permute.xlu0 %983
          %vm985 = vcmask 982016
          %v986 = vsel %vm985, %v978, %v980
          %v987 = vsel %vm985, %v980, %v982
          %v988 = vsel %vm985, %v982, %v984
          %992 = vst [vmem:[#allocation2 + $0x2b8] sm:$0xff] %v986
          %993 = vst [vmem:[#allocation2 + $0x2c0] sm:$0xff] %v987
          %994 = vst [vmem:[#allocation2 + $0x2c8] sm:$0xff] %v988
          %v995 = vld [vmem:[%s224] sm:$0xff]
          %v996 = vld [vmem:[%s224 + $0x8] sm:$0xff]
          %v997 = vld [vmem:[%s224 + $0x10] sm:$0xff]
          %v998 = vld [vmem:[%s224 + $0x18] sm:$0xff]
          %1003 = vrot.lane.b32.xlu0 %v995, 32
          %v1004 = vpop.permute.xlu0 %1003
          %1005 = vrot.lane.b32.xlu0 %v996, 32
          %v1006 = vpop.permute.xlu0 %1005
          %1007 = vrot.lane.b32.xlu0 %v997, 32
          %v1008 = vpop.permute.xlu0 %1007
          %1009 = vrot.lane.b32.xlu0 %v998, 32
          %v1010 = vpop.permute.xlu0 %1009
          %vm1011 = vcmask 261120
          %v1012 = vsel %vm1011, %v1004, %v1006
          %v1013 = vsel %vm1011, %v1006, %v1008
          %v1014 = vsel %vm1011, %v1008, %v1010
          %1018 = vst [vmem:[#allocation2 + $0x2d0] sm:$0xff] %v1012
          %1019 = vst [vmem:[#allocation2 + $0x2d8] sm:$0xff] %v1013
          %1020 = vst [vmem:[#allocation2 + $0x2e0] sm:$0xff] %v1014
          %v1021 = vld [vmem:[%s224] sm:$0xff]
          %v1022 = vld [vmem:[%s224 + $0x8] sm:$0xff]
          %v1023 = vld [vmem:[%s224 + $0x10] sm:$0xff]
          %v1024 = vld [vmem:[%s224 + $0x18] sm:$0xff]
          %1029 = vrot.lane.b32.xlu0 %v1021, 28
          %v1030 = vpop.permute.xlu0 %1029
          %1031 = vrot.lane.b32.xlu0 %v1022, 28
          %v1032 = vpop.permute.xlu0 %1031
          %1033 = vrot.lane.b32.xlu0 %v1023, 28
          %v1034 = vpop.permute.xlu0 %1033
          %1035 = vrot.lane.b32.xlu0 %v1024, 28
          %v1036 = vpop.permute.xlu0 %1035
          %v1037 = vsel %vm357, %v1030, %v1032
          %v1038 = vsel %vm357, %v1032, %v1034
          %v1039 = vsel %vm357, %v1034, %v1036
          %1043 = vst [vmem:[#allocation2 + $0x2e8] sm:$0xff] %v1037
          %1044 = vst [vmem:[#allocation2 + $0x2f0] sm:$0xff] %v1038
          %1045 = vst [vmem:[#allocation2 + $0x2f8] sm:$0xff] %v1039
          %v1046 = vld [vmem:[%s224] sm:$0xff]
          %v1047 = vld [vmem:[%s224 + $0x8] sm:$0xff]
          %v1048 = vld [vmem:[%s224 + $0x10] sm:$0xff]
          %v1049 = vld [vmem:[%s224 + $0x18] sm:$0xff]
          %1054 = vrot.lane.b32.xlu0 %v1046, 24
          %v1055 = vpop.permute.xlu0 %1054
          %1056 = vrot.lane.b32.xlu0 %v1047, 24
          %v1057 = vpop.permute.xlu0 %1056
          %1058 = vrot.lane.b32.xlu0 %v1048, 24
          %v1059 = vpop.permute.xlu0 %1058
          %1060 = vrot.lane.b32.xlu0 %v1049, 24
          %v1061 = vpop.permute.xlu0 %1060
          %vm1062 = vcmask 195584
          %v1063 = vsel %vm1062, %v1055, %v1057
          %v1064 = vsel %vm1062, %v1057, %v1059
          %v1065 = vsel %vm1062, %v1059, %v1061
          %1069 = vst [vmem:[#allocation2 + $0x300] sm:$0xff] %v1063
          %1070 = vst [vmem:[#allocation2 + $0x308] sm:$0xff] %v1064
          %1071 = vst [vmem:[#allocation2 + $0x310] sm:$0xff] %v1065
          %v1072 = vld [vmem:[%s224 + $0x8] sm:$0xff]
          %v1073 = vld [vmem:[%s224 + $0x10] sm:$0xff]
          %v1074 = vld [vmem:[%s224 + $0x18] sm:$0xff]
          %v1075 = vld [vmem:[%s224 + $0x20] sm:$0xff]
          %1080 = vrot.lane.b32.xlu0 %v1072, 64
          %v1081 = vpop.permute.xlu0 %1080
          %1082 = vrot.lane.b32.xlu0 %v1073, 64
          %v1083 = vpop.permute.xlu0 %1082
          %1084 = vrot.lane.b32.xlu0 %v1074, 64
          %v1085 = vpop.permute.xlu0 %1084
          %1086 = vrot.lane.b32.xlu0 %v1075, 64
          %v1087 = vpop.permute.xlu0 %1086
          %vm1088 = vcmask 523264
          %v1089 = vsel %vm1088, %v1081, %v1083
          %v1090 = vsel %vm1088, %v1083, %v1085
          %v1091 = vsel %vm1088, %v1085, %v1087
          %1095 = vst [vmem:[#allocation2 + $0x318] sm:$0xff] %v1089
          %1096 = vst [vmem:[#allocation2 + $0x320] sm:$0xff] %v1090
          %1097 = vst [vmem:[#allocation2 + $0x328] sm:$0xff] %v1091
          %v1098 = vld [vmem:[%s224 + $0x8] sm:$0xff]
          %v1099 = vld [vmem:[%s224 + $0x10] sm:$0xff]
          %v1100 = vld [vmem:[%s224 + $0x18] sm:$0xff]
          %v1101 = vld [vmem:[%s224 + $0x20] sm:$0xff]
          %1106 = vrot.lane.b32.xlu0 %v1098, 60
          %v1107 = vpop.permute.xlu0 %1106
          %1108 = vrot.lane.b32.xlu0 %v1099, 60
          %v1109 = vpop.permute.xlu0 %1108
          %1110 = vrot.lane.b32.xlu0 %v1100, 60
          %v1111 = vpop.permute.xlu0 %1110
          %1112 = vrot.lane.b32.xlu0 %v1101, 60
          %v1113 = vpop.permute.xlu0 %1112
          %vm1114 = vcmask 490496
          %v1115 = vsel %vm1114, %v1107, %v1109
          %v1116 = vsel %vm1114, %v1109, %v1111
          %v1117 = vsel %vm1114, %v1111, %v1113
          %1121 = vst [vmem:[#allocation2 + $0x330] sm:$0xff] %v1115
          %1122 = vst [vmem:[#allocation2 + $0x338] sm:$0xff] %v1116
          %1123 = vst [vmem:[#allocation2 + $0x340] sm:$0xff] %v1117
          %v1124 = vld [vmem:[%s224 + $0x8] sm:$0xff]
          %v1125 = vld [vmem:[%s224 + $0x10] sm:$0xff]
          %v1126 = vld [vmem:[%s224 + $0x18] sm:$0xff]
          %v1127 = vld [vmem:[%s224 + $0x20] sm:$0xff]
          %1132 = vrot.lane.b32.xlu0 %v1124, 56
          %v1133 = vpop.permute.xlu0 %1132
          %1134 = vrot.lane.b32.xlu0 %v1125, 56
          %v1135 = vpop.permute.xlu0 %1134
          %1136 = vrot.lane.b32.xlu0 %v1126, 56
          %v1137 = vpop.permute.xlu0 %1136
          %1138 = vrot.lane.b32.xlu0 %v1127, 56
          %v1139 = vpop.permute.xlu0 %1138
          %vm1140 = vcmask 457728
          %v1141 = vsel %vm1140, %v1133, %v1135
          %v1142 = vsel %vm1140, %v1135, %v1137
          %v1143 = vsel %vm1140, %v1137, %v1139
          %1147 = vst [vmem:[#allocation2 + $0x348] sm:$0xff] %v1141
          %1148 = vst [vmem:[#allocation2 + $0x350] sm:$0xff] %v1142
          %1149 = vst [vmem:[#allocation2 + $0x358] sm:$0xff] %v1143
          %1150 = vst [vmem:[#allocation2 + $0x360] sm:$0xff] 0.0
          %1151 = vst [vmem:[#allocation2 + $0x368] sm:$0xff] 0.0
          %1152 = vst [vmem:[#allocation2 + $0x370] sm:$0xff] 0.0
          %1153 = vst [vmem:[#allocation2 + $0x378] sm:$0xff] 0.0
          %1154 = vst [vmem:[#allocation2 + $0x380] sm:$0xff] 0.0
          %1155 = vst [vmem:[#allocation2 + $0x388] sm:$0xff] 0.0
          %1156 = vst [vmem:[#allocation2 + $0x390] sm:$0xff] 0.0
          %1157 = vst [vmem:[#allocation2 + $0x398] sm:$0xff] 0.0
          %1158 = vst [vmem:[#allocation2 + $0x3a0] sm:$0xff] 0.0
          %1159 = vst [vmem:[#allocation2 + $0x3a8] sm:$0xff] 0.0
          %1160 = vst [vmem:[#allocation2 + $0x3b0] sm:$0xff] 0.0
          %1161 = vst [vmem:[#allocation2 + $0x3b8] sm:$0xff] 0.0
          %1162 = vst [vmem:[#allocation2 + $0x3c0] sm:$0xff] 0.0
          %1163 = vst [vmem:[#allocation2 + $0x3c8] sm:$0xff] 0.0
          %1164 = vst [vmem:[#allocation2 + $0x3d0] sm:$0xff] 0.0
          %1165 = vst [vmem:[#allocation2 + $0x3d8] sm:$0xff] 0.0
          %1166 = vst [vmem:[#allocation2 + $0x3e0] sm:$0xff] 0.0
          %1167 = vst [vmem:[#allocation2 + $0x3e8] sm:$0xff] 0.0
          %1168 = vst [vmem:[#allocation2 + $0x3f0] sm:$0xff] 0.0
          %1169 = vst [vmem:[#allocation2 + $0x3f8] sm:$0xff] 0.0
          %1170 = vst [vmem:[#allocation2 + $0x400] sm:$0xff] 0.0
          %1171 = vst [vmem:[#allocation2 + $0x408] sm:$0xff] 0.0
          %1172 = vst [vmem:[#allocation2 + $0x410] sm:$0xff] 0.0
          %1173 = vst [vmem:[#allocation2 + $0x418] sm:$0xff] 0.0
          %1174 = vst [vmem:[#allocation2 + $0x420] sm:$0xff] 0.0
          %1175 = vst [vmem:[#allocation2 + $0x428] sm:$0xff] 0.0
          %1176 = vst [vmem:[#allocation2 + $0x430] sm:$0xff] 0.0
          %1177 = vst [vmem:[#allocation2 + $0x438] sm:$0xff] 0.0
          %1178 = vst [vmem:[#allocation2 + $0x440] sm:$0xff] 0.0
          %1179 = vst [vmem:[#allocation2 + $0x448] sm:$0xff] 0.0
          %1180 = vst [vmem:[#allocation2 + $0x450] sm:$0xff] 0.0
          %1181 = vst [vmem:[#allocation2 + $0x458] sm:$0xff] 0.0
          %1182 = vst [vmem:[#allocation2 + $0x460] sm:$0xff] 0.0
          %1183 = vst [vmem:[#allocation2 + $0x468] sm:$0xff] 0.0
          %1184 = vst [vmem:[#allocation2 + $0x470] sm:$0xff] 0.0
          %1185 = vst [vmem:[#allocation2 + $0x478] sm:$0xff] 0.0
        $region40: #{tpu_custom_call.1} parent=31 // pred_fallthru
          _
        %v1186 = vld [vmem:[#allocation3] sm:$0xff]
        %v1187 = vld [vmem:[#allocation3 + $0x8] sm:$0xff]
        %v1188 = vld [vmem:[#allocation3 + $0x10] sm:$0xff]
        %v1189 = vld [vmem:[#allocation3 + $0x18] sm:$0xff]
        %v1190 = vld [vmem:[#allocation3 + $0x20] sm:$0xff]
        %v1191 = vld [vmem:[#allocation3 + $0x28] sm:$0xff]
        %v1192 = vld [vmem:[#allocation3 + $0x30] sm:$0xff]
        %v1193 = vld [vmem:[#allocation3 + $0x38] sm:$0xff]
        %v1194 = vld [vmem:[#allocation3 + $0x40] sm:$0xff]
        %v1195 = vld [vmem:[#allocation3 + $0x48] sm:$0xff]
        %v1196 = vld [vmem:[#allocation3 + $0x50] sm:$0xff]
        %v1197 = vld [vmem:[#allocation3 + $0x58] sm:$0xff]
        %v1198 = vld [vmem:[#allocation3 + $0x60] sm:$0xff]
        %v1199 = vld [vmem:[#allocation3 + $0x68] sm:$0xff]
        %v1200 = vld [vmem:[#allocation3 + $0x70] sm:$0xff]
        %v1201 = vld [vmem:[#allocation3 + $0x78] sm:$0xff]
        %v1202 = vld [vmem:[#allocation3 + $0x80] sm:$0xff]
        %v1203 = vld [vmem:[#allocation3 + $0x88] sm:$0xff]
        %v1204 = vld [vmem:[#allocation3 + $0x90] sm:$0xff]
        %v1205 = vld [vmem:[#allocation3 + $0x98] sm:$0xff]
        %v1206 = vld [vmem:[#allocation3 + $0xa0] sm:$0xff]
        %v1207 = vld [vmem:[#allocation3 + $0xa8] sm:$0xff]
        %v1208 = vld [vmem:[#allocation3 + $0xb0] sm:$0xff]
        %v1209 = vld [vmem:[#allocation3 + $0xb8] sm:$0xff]
        %v1210 = vld [vmem:[#allocation3 + $0xc0] sm:$0xff]
        %v1211 = vld [vmem:[#allocation3 + $0xc8] sm:$0xff]
        %v1212 = vld [vmem:[#allocation3 + $0xd0] sm:$0xff]
        %v1213 = vld [vmem:[#allocation3 + $0xd8] sm:$0xff]
        %v1214 = vld [vmem:[#allocation3 + $0xe0] sm:$0xff]
        %v1215 = vld [vmem:[#allocation3 + $0xe8] sm:$0xff]
        %v1216 = vld [vmem:[#allocation3 + $0xf0] sm:$0xff]
        %v1217 = vld [vmem:[#allocation3 + $0xf8] sm:$0xff]
        %v1218 = vld [vmem:[#allocation3 + $0x100] sm:$0xff]
        %v1219 = vld [vmem:[#allocation3 + $0x108] sm:$0xff]
        %v1220 = vld [vmem:[#allocation3 + $0x110] sm:$0xff]
        %v1221 = vld [vmem:[#allocation3 + $0x118] sm:$0xff]
        %v1222 = vld [vmem:[#allocation3 + $0x120] sm:$0xff]
        %v1223 = vld [vmem:[#allocation3 + $0x128] sm:$0xff]
        %v1224 = vld [vmem:[#allocation3 + $0x130] sm:$0xff]
        %v1225 = vld [vmem:[#allocation3 + $0x138] sm:$0xff]
        %v1226 = vld [vmem:[#allocation3 + $0x140] sm:$0xff]
        %v1227 = vld [vmem:[#allocation3 + $0x148] sm:$0xff]
        %v1228 = vld [vmem:[#allocation3 + $0x150] sm:$0xff]
        %v1229 = vld [vmem:[#allocation3 + $0x158] sm:$0xff]
        %v1230 = vld [vmem:[#allocation3 + $0x160] sm:$0xff]
        %v1231 = vld [vmem:[#allocation3 + $0x168] sm:$0xff]
        %v1232 = vld [vmem:[#allocation3 + $0x170] sm:$0xff]
        %v1233 = vld [vmem:[#allocation3 + $0x178] sm:$0xff]
        %v1234 = vld [vmem:[#allocation2] sm:$0xff]
        %v1235 = vld [vmem:[#allocation2 + $0x8] sm:$0xff]
        %v1236 = vld [vmem:[#allocation2 + $0x10] sm:$0xff]
        %v1237 = vld [vmem:[#allocation2 + $0x18] sm:$0xff]
        %v1238 = vld [vmem:[#allocation2 + $0x20] sm:$0xff]
        %v1239 = vld [vmem:[#allocation2 + $0x28] sm:$0xff]
        %v1240 = vld [vmem:[#allocation2 + $0x30] sm:$0xff]
        %v1241 = vld [vmem:[#allocation2 + $0x38] sm:$0xff]
        %v1242 = vld [vmem:[#allocation2 + $0x40] sm:$0xff]
        %v1243 = vld [vmem:[#allocation2 + $0x48] sm:$0xff]
        %v1244 = vld [vmem:[#allocation2 + $0x50] sm:$0xff]
        %v1245 = vld [vmem:[#allocation2 + $0x58] sm:$0xff]
        %v1246 = vld [vmem:[#allocation2 + $0x60] sm:$0xff]
        %v1247 = vld [vmem:[#allocation2 + $0x68] sm:$0xff]
        %v1248 = vld [vmem:[#allocation2 + $0x70] sm:$0xff]
        %v1249 = vld [vmem:[#allocation2 + $0x78] sm:$0xff]
        %v1250 = vld [vmem:[#allocation2 + $0x80] sm:$0xff]
        %v1251 = vld [vmem:[#allocation2 + $0x88] sm:$0xff]
        %v1252 = vld [vmem:[#allocation2 + $0x90] sm:$0xff]
        %v1253 = vld [vmem:[#allocation2 + $0x98] sm:$0xff]
        %v1254 = vld [vmem:[#allocation2 + $0xa0] sm:$0xff]
        %v1255 = vld [vmem:[#allocation2 + $0xa8] sm:$0xff]
        %v1256 = vld [vmem:[#allocation2 + $0xb0] sm:$0xff]
        %v1257 = vld [vmem:[#allocation2 + $0xb8] sm:$0xff]
        %v1258 = vld [vmem:[#allocation2 + $0xc0] sm:$0xff]
        %v1259 = vld [vmem:[#allocation2 + $0xc8] sm:$0xff]
        %v1260 = vld [vmem:[#allocation2 + $0xd0] sm:$0xff]
        %v1261 = vld [vmem:[#allocation2 + $0xd8] sm:$0xff]
        %v1262 = vld [vmem:[#allocation2 + $0xe0] sm:$0xff]
        %v1263 = vld [vmem:[#allocation2 + $0xe8] sm:$0xff]
        %v1264 = vld [vmem:[#allocation2 + $0xf0] sm:$0xff]
        %v1265 = vld [vmem:[#allocation2 + $0xf8] sm:$0xff]
        %v1266 = vld [vmem:[#allocation2 + $0x100] sm:$0xff]
        %v1267 = vld [vmem:[#allocation2 + $0x108] sm:$0xff]
        %v1268 = vld [vmem:[#allocation2 + $0x110] sm:$0xff]
        %v1269 = vld [vmem:[#allocation2 + $0x118] sm:$0xff]
        %v1270 = vld [vmem:[#allocation2 + $0x120] sm:$0xff]
        %v1271 = vld [vmem:[#allocation2 + $0x128] sm:$0xff]
        %v1272 = vld [vmem:[#allocation2 + $0x130] sm:$0xff]
        %v1273 = vld [vmem:[#allocation2 + $0x138] sm:$0xff]
        %v1274 = vld [vmem:[#allocation2 + $0x140] sm:$0xff]
        %v1275 = vld [vmem:[#allocation2 + $0x148] sm:$0xff]
        %v1276 = vld [vmem:[#allocation2 + $0x150] sm:$0xff]
        %v1277 = vld [vmem:[#allocation2 + $0x158] sm:$0xff]
        %v1278 = vld [vmem:[#allocation2 + $0x160] sm:$0xff]
        %v1279 = vld [vmem:[#allocation2 + $0x168] sm:$0xff]
        %v1280 = vld [vmem:[#allocation2 + $0x170] sm:$0xff]
        %v1281 = vld [vmem:[#allocation2 + $0x178] sm:$0xff]
        %v1282 = vld [vmem:[#allocation2 + $0x180] sm:$0xff]
        %v1283 = vld [vmem:[#allocation2 + $0x188] sm:$0xff]
        %v1284 = vld [vmem:[#allocation2 + $0x190] sm:$0xff]
        %v1285 = vld [vmem:[#allocation2 + $0x198] sm:$0xff]
        %v1286 = vld [vmem:[#allocation2 + $0x1a0] sm:$0xff]
        %v1287 = vld [vmem:[#allocation2 + $0x1a8] sm:$0xff]
        %v1288 = vld [vmem:[#allocation2 + $0x1b0] sm:$0xff]
        %v1289 = vld [vmem:[#allocation2 + $0x1b8] sm:$0xff]
        %v1290 = vld [vmem:[#allocation2 + $0x1c0] sm:$0xff]
        %v1291 = vld [vmem:[#allocation2 + $0x1c8] sm:$0xff]
        %v1292 = vld [vmem:[#allocation2 + $0x1d0] sm:$0xff]
        %v1293 = vld [vmem:[#allocation2 + $0x1d8] sm:$0xff]
        %v1294 = vld [vmem:[#allocation2 + $0x1e0] sm:$0xff]
        %v1295 = vld [vmem:[#allocation2 + $0x1e8] sm:$0xff]
        %v1296 = vld [vmem:[#allocation2 + $0x1f0] sm:$0xff]
        %v1297 = vld [vmem:[#allocation2 + $0x1f8] sm:$0xff]
        %v1298 = vld [vmem:[#allocation2 + $0x200] sm:$0xff]
        %v1299 = vld [vmem:[#allocation2 + $0x208] sm:$0xff]
        %v1300 = vld [vmem:[#allocation2 + $0x210] sm:$0xff]
        %v1301 = vld [vmem:[#allocation2 + $0x218] sm:$0xff]
        %v1302 = vld [vmem:[#allocation2 + $0x220] sm:$0xff]
        %v1303 = vld [vmem:[#allocation2 + $0x228] sm:$0xff]
        %v1304 = vld [vmem:[#allocation2 + $0x230] sm:$0xff]
        %v1305 = vld [vmem:[#allocation2 + $0x238] sm:$0xff]
        %v1306 = vld [vmem:[#allocation2 + $0x240] sm:$0xff]
        %v1307 = vld [vmem:[#allocation2 + $0x248] sm:$0xff]
        %v1308 = vld [vmem:[#allocation2 + $0x250] sm:$0xff]
        %v1309 = vld [vmem:[#allocation2 + $0x258] sm:$0xff]
        %v1310 = vld [vmem:[#allocation2 + $0x260] sm:$0xff]
        %v1311 = vld [vmem:[#allocation2 + $0x268] sm:$0xff]
        %v1312 = vld [vmem:[#allocation2 + $0x270] sm:$0xff]
        %v1313 = vld [vmem:[#allocation2 + $0x278] sm:$0xff]
        %v1314 = vld [vmem:[#allocation2 + $0x280] sm:$0xff]
        %v1315 = vld [vmem:[#allocation2 + $0x288] sm:$0xff]
        %v1316 = vld [vmem:[#allocation2 + $0x290] sm:$0xff]
        %v1317 = vld [vmem:[#allocation2 + $0x298] sm:$0xff]
        %v1318 = vld [vmem:[#allocation2 + $0x2a0] sm:$0xff]
        %v1319 = vld [vmem:[#allocation2 + $0x2a8] sm:$0xff]
        %v1320 = vld [vmem:[#allocation2 + $0x2b0] sm:$0xff]
        %v1321 = vld [vmem:[#allocation2 + $0x2b8] sm:$0xff]
        %v1322 = vld [vmem:[#allocation2 + $0x2c0] sm:$0xff]
        %v1323 = vld [vmem:[#allocation2 + $0x2c8] sm:$0xff]
        %v1324 = vld [vmem:[#allocation2 + $0x2d0] sm:$0xff]
        %v1325 = vld [vmem:[#allocation2 + $0x2d8] sm:$0xff]
        %v1326 = vld [vmem:[#allocation2 + $0x2e0] sm:$0xff]
        %v1327 = vld [vmem:[#allocation2 + $0x2e8] sm:$0xff]
        %v1328 = vld [vmem:[#allocation2 + $0x2f0] sm:$0xff]
        %v1329 = vld [vmem:[#allocation2 + $0x2f8] sm:$0xff]
        %v1330 = vld [vmem:[#allocation2 + $0x300] sm:$0xff]
        %v1331 = vld [vmem:[#allocation2 + $0x308] sm:$0xff]
        %v1332 = vld [vmem:[#allocation2 + $0x310] sm:$0xff]
        %v1333 = vld [vmem:[#allocation2 + $0x318] sm:$0xff]
        %v1334 = vld [vmem:[#allocation2 + $0x320] sm:$0xff]
        %v1335 = vld [vmem:[#allocation2 + $0x328] sm:$0xff]
        %v1336 = vld [vmem:[#allocation2 + $0x330] sm:$0xff]
        %v1337 = vld [vmem:[#allocation2 + $0x338] sm:$0xff]
        %v1338 = vld [vmem:[#allocation2 + $0x340] sm:$0xff]
        %v1339 = vld [vmem:[#allocation2 + $0x348] sm:$0xff]
        %v1340 = vld [vmem:[#allocation2 + $0x350] sm:$0xff]
        %v1341 = vld [vmem:[#allocation2 + $0x358] sm:$0xff]
        %v1342 = vld [vmem:[#allocation2 + $0x360] sm:$0xff]
        %v1343 = vld [vmem:[#allocation2 + $0x368] sm:$0xff]
        %v1344 = vld [vmem:[#allocation2 + $0x370] sm:$0xff]
        %v1345 = vld [vmem:[#allocation2 + $0x378] sm:$0xff]
        %v1346 = vld [vmem:[#allocation2 + $0x380] sm:$0xff]
        %v1347 = vld [vmem:[#allocation2 + $0x388] sm:$0xff]
        %v1348 = vld [vmem:[#allocation2 + $0x390] sm:$0xff]
        %v1349 = vld [vmem:[#allocation2 + $0x398] sm:$0xff]
        %v1350 = vld [vmem:[#allocation2 + $0x3a0] sm:$0xff]
        %v1351 = vld [vmem:[#allocation2 + $0x3a8] sm:$0xff]
        %v1352 = vld [vmem:[#allocation2 + $0x3b0] sm:$0xff]
        %v1353 = vld [vmem:[#allocation2 + $0x3b8] sm:$0xff]
        %v1354 = vld [vmem:[#allocation2 + $0x3c0] sm:$0xff]
        %v1355 = vld [vmem:[#allocation2 + $0x3c8] sm:$0xff]
        %v1356 = vld [vmem:[#allocation2 + $0x3d0] sm:$0xff]
        %v1357 = vld [vmem:[#allocation2 + $0x3d8] sm:$0xff]
        %v1358 = vld [vmem:[#allocation2 + $0x3e0] sm:$0xff]
        %v1359 = vld [vmem:[#allocation2 + $0x3e8] sm:$0xff]
        %v1360 = vld [vmem:[#allocation2 + $0x3f0] sm:$0xff]
        %v1361 = vld [vmem:[#allocation2 + $0x3f8] sm:$0xff]
        %v1362 = vld [vmem:[#allocation2 + $0x400] sm:$0xff]
        %v1363 = vld [vmem:[#allocation2 + $0x408] sm:$0xff]
        %v1364 = vld [vmem:[#allocation2 + $0x410] sm:$0xff]
        %v1365 = vld [vmem:[#allocation2 + $0x418] sm:$0xff]
        %v1366 = vld [vmem:[#allocation2 + $0x420] sm:$0xff]
        %v1367 = vld [vmem:[#allocation2 + $0x428] sm:$0xff]
        %v1368 = vld [vmem:[#allocation2 + $0x430] sm:$0xff]
        %v1369 = vld [vmem:[#allocation2 + $0x438] sm:$0xff]
        %v1370 = vld [vmem:[#allocation2 + $0x440] sm:$0xff]
        %v1371 = vld [vmem:[#allocation2 + $0x448] sm:$0xff]
        %v1372 = vld [vmem:[#allocation2 + $0x450] sm:$0xff]
        %v1373 = vld [vmem:[#allocation2 + $0x458] sm:$0xff]
        %v1374 = vld [vmem:[#allocation2 + $0x460] sm:$0xff]
        %v1375 = vld [vmem:[#allocation2 + $0x468] sm:$0xff]
        %v1376 = vld [vmem:[#allocation2 + $0x470] sm:$0xff]
        %v1377 = vld [vmem:[#allocation2 + $0x478] sm:$0xff]
        %v1378 = vld [vmem:[%s230] sm:$0xff]
        %v1379 = vld [vmem:[%s230 + $0x8] sm:$0xff]
        %v1380 = vld [vmem:[%s230 + $0x10] sm:$0xff]
        %v1381 = vld [vmem:[%s230 + $0x18] sm:$0xff]
        %v1382 = vld [vmem:[%s230 + $0x20] sm:$0xff]
        %v1383 = vld [vmem:[%s230 + $0x28] sm:$0xff]
        %v1384 = vld [vmem:[%s230 + $0x30] sm:$0xff]
        %v1385 = vld [vmem:[%s230 + $0x38] sm:$0xff]
        %v1386 = vld [vmem:[%s230 + $0x40] sm:$0xff]
        %v1387 = vld [vmem:[%s230 + $0x48] sm:$0xff]
        %v1388 = vld [vmem:[%s230 + $0x50] sm:$0xff]
        %v1389 = vld [vmem:[%s230 + $0x58] sm:$0xff]
        %v1390 = vld [vmem:[%s230 + $0x60] sm:$0xff]
        %v1391 = vld [vmem:[%s230 + $0x68] sm:$0xff]
        %v1392 = vld [vmem:[%s230 + $0x70] sm:$0xff]
        %v1393 = vld [vmem:[%s230 + $0x78] sm:$0xff]
        %1395 = vset.pattern.permute.xlu0 0
        %1396 = vperm.xlu0 %1395, %v1378
        %v1397 = vpop.permute.xlu0 %1396
        %1400 = vset.pattern.permute.xlu0 0
        %1401 = vperm.xlu0 %1400, %v1379
        %v1402 = vpop.permute.xlu0 %1401
        %1405 = vset.pattern.permute.xlu0 0
        %1406 = vperm.xlu0 %1405, %v1380
        %v1407 = vpop.permute.xlu0 %1406
        %1410 = vset.pattern.permute.xlu0 0
        %1411 = vperm.xlu0 %1410, %v1381
        %v1412 = vpop.permute.xlu0 %1411
        %1415 = vset.pattern.permute.xlu0 0
        %1416 = vperm.xlu0 %1415, %v1382
        %v1417 = vpop.permute.xlu0 %1416
        %1420 = vset.pattern.permute.xlu0 0
        %1421 = vperm.xlu0 %1420, %v1383
        %v1422 = vpop.permute.xlu0 %1421
        %1425 = vset.pattern.permute.xlu0 0
        %1426 = vperm.xlu0 %1425, %v1384
        %v1427 = vpop.permute.xlu0 %1426
        %1430 = vset.pattern.permute.xlu0 0
        %1431 = vperm.xlu0 %1430, %v1385
        %v1432 = vpop.permute.xlu0 %1431
        %1435 = vset.pattern.permute.xlu0 0
        %1436 = vperm.xlu0 %1435, %v1386
        %v1437 = vpop.permute.xlu0 %1436
        %1440 = vset.pattern.permute.xlu0 0
        %1441 = vperm.xlu0 %1440, %v1387
        %v1442 = vpop.permute.xlu0 %1441
        %1445 = vset.pattern.permute.xlu0 0
        %1446 = vperm.xlu0 %1445, %v1388
        %v1447 = vpop.permute.xlu0 %1446
        %1450 = vset.pattern.permute.xlu0 0
        %1451 = vperm.xlu0 %1450, %v1389
        %v1452 = vpop.permute.xlu0 %1451
        %1455 = vset.pattern.permute.xlu0 0
        %1456 = vperm.xlu0 %1455, %v1390
        %v1457 = vpop.permute.xlu0 %1456
        %1460 = vset.pattern.permute.xlu0 0
        %1461 = vperm.xlu0 %1460, %v1391
        %v1462 = vpop.permute.xlu0 %1461
        %1465 = vset.pattern.permute.xlu0 0
        %1466 = vperm.xlu0 %1465, %v1392
        %v1467 = vpop.permute.xlu0 %1466
        %1470 = vset.pattern.permute.xlu0 0
        %1471 = vperm.xlu0 %1470, %v1393
        %v1472 = vpop.permute.xlu0 %1471
        %1474 = vmatpush.msra.mxu0 %v1279
        %1475 = vmatpush.msra.mxu0 %v1276
        %1476 = vmatpush.msra.mxu0 %v1273
        %1477 = vmatpush.msra.mxu0 %v1270
        %1478 = vmatpush.msra.mxu0 %v1267
        %1479 = vmatpush.msra.mxu0 %v1264
        %1480 = vmatpush.msra.mxu0 %v1261
        %1481 = vmatpush.msra.mxu0 %v1258
        %1482 = vmatpush.msra.mxu0 %v1255
        %1483 = vmatpush.msra.mxu0 %v1252
        %1484 = vmatpush.msra.mxu0 %v1249
        %1485 = vmatpush.msra.mxu0 %v1246
        %1486 = vmatpush.msra.mxu0 %v1243
        %1487 = vmatpush.msra.mxu0 %v1240
        %1488 = vmatpush.msra.mxu0 %v1237
        %1489 = vmatpush.msra.mxu0 %v1234
        %1490 = vmatmul.f32.gmra.mxu0 %v1186
        %v1491 = vpop.f32.mrf.mxu0
        %v1492 = vadd.f32 %v1397, %v1491
        %1493 = vmatmul.f32.gmra.mxu0 %v1189
        %v1494 = vpop.f32.mrf.mxu0
        %v1495 = vadd.f32 %v1402, %v1494
        %1496 = vmatmul.f32.gmra.mxu0 %v1192
        %v1497 = vpop.f32.mrf.mxu0
        %v1498 = vadd.f32 %v1407, %v1497
        %1499 = vmatmul.f32.gmra.mxu0 %v1195
        %v1500 = vpop.f32.mrf.mxu0
        %v1501 = vadd.f32 %v1412, %v1500
        %1502 = vmatmul.f32.gmra.mxu0 %v1198
        %v1503 = vpop.f32.mrf.mxu0
        %v1504 = vadd.f32 %v1417, %v1503
        %1505 = vmatmul.f32.gmra.mxu0 %v1201
        %v1506 = vpop.f32.mrf.mxu0
        %v1507 = vadd.f32 %v1422, %v1506
        %1508 = vmatmul.f32.gmra.mxu0 %v1204
        %v1509 = vpop.f32.mrf.mxu0
        %v1510 = vadd.f32 %v1427, %v1509
        %1511 = vmatmul.f32.gmra.mxu0 %v1207
        %v1512 = vpop.f32.mrf.mxu0
        %v1513 = vadd.f32 %v1432, %v1512
        %1514 = vmatmul.f32.gmra.mxu0 %v1210
        %v1515 = vpop.f32.mrf.mxu0
        %v1516 = vadd.f32 %v1437, %v1515
        %1517 = vmatmul.f32.gmra.mxu0 %v1213
        %v1518 = vpop.f32.mrf.mxu0
        %v1519 = vadd.f32 %v1442, %v1518
        %1520 = vmatmul.f32.gmra.mxu0 %v1216
        %v1521 = vpop.f32.mrf.mxu0
        %v1522 = vadd.f32 %v1447, %v1521
        %1523 = vmatmul.f32.gmra.mxu0 %v1219
        %v1524 = vpop.f32.mrf.mxu0
        %v1525 = vadd.f32 %v1452, %v1524
        %1526 = vmatmul.f32.gmra.mxu0 %v1222
        %v1527 = vpop.f32.mrf.mxu0
        %v1528 = vadd.f32 %v1457, %v1527
        %1529 = vmatmul.f32.gmra.mxu0 %v1225
        %v1530 = vpop.f32.mrf.mxu0
        %v1531 = vadd.f32 %v1462, %v1530
        %1532 = vmatmul.f32.gmra.mxu0 %v1228
        %v1533 = vpop.f32.mrf.mxu0
        %v1534 = vadd.f32 %v1467, %v1533
        %1535 = vmatmul.f32.gmra.mxu0 %v1231
        %v1536 = vpop.f32.mrf.mxu0
        %v1537 = vadd.f32 %v1472, %v1536
        %1538 = vdwg.mxu0
        %1539 = vmatpush.msra.mxu0 %v1327
        %1540 = vmatpush.msra.mxu0 %v1324
        %1541 = vmatpush.msra.mxu0 %v1321
        %1542 = vmatpush.msra.mxu0 %v1318
        %1543 = vmatpush.msra.mxu0 %v1315
        %1544 = vmatpush.msra.mxu0 %v1312
        %1545 = vmatpush.msra.mxu0 %v1309
        %1546 = vmatpush.msra.mxu0 %v1306
        %1547 = vmatpush.msra.mxu0 %v1303
        %1548 = vmatpush.msra.mxu0 %v1300
        %1549 = vmatpush.msra.mxu0 %v1297
        %1550 = vmatpush.msra.mxu0 %v1294
        %1551 = vmatpush.msra.mxu0 %v1291
        %1552 = vmatpush.msra.mxu0 %v1288
        %1553 = vmatpush.msra.mxu0 %v1285
        %1554 = vmatpush.msra.mxu0 %v1282
        %1555 = vmatmul.f32.gmra.mxu0 %v1187
        %v1556 = vpop.f32.mrf.mxu0
        %v1557 = vadd.f32 %v1492, %v1556
        %1558 = vmatmul.f32.gmra.mxu0 %v1190
        %v1559 = vpop.f32.mrf.mxu0
        %v1560 = vadd.f32 %v1495, %v1559
        %1561 = vmatmul.f32.gmra.mxu0 %v1193
        %v1562 = vpop.f32.mrf.mxu0
        %v1563 = vadd.f32 %v1498, %v1562
        %1564 = vmatmul.f32.gmra.mxu0 %v1196
        %v1565 = vpop.f32.mrf.mxu0
        %v1566 = vadd.f32 %v1501, %v1565
        %1567 = vmatmul.f32.gmra.mxu0 %v1199
        %v1568 = vpop.f32.mrf.mxu0
        %v1569 = vadd.f32 %v1504, %v1568
        %1570 = vmatmul.f32.gmra.mxu0 %v1202
        %v1571 = vpop.f32.mrf.mxu0
        %v1572 = vadd.f32 %v1507, %v1571
        %1573 = vmatmul.f32.gmra.mxu0 %v1205
        %v1574 = vpop.f32.mrf.mxu0
        %v1575 = vadd.f32 %v1510, %v1574
        %1576 = vmatmul.f32.gmra.mxu0 %v1208
        %v1577 = vpop.f32.mrf.mxu0
        %v1578 = vadd.f32 %v1513, %v1577
        %1579 = vmatmul.f32.gmra.mxu0 %v1211
        %v1580 = vpop.f32.mrf.mxu0
        %v1581 = vadd.f32 %v1516, %v1580
        %1582 = vmatmul.f32.gmra.mxu0 %v1214
        %v1583 = vpop.f32.mrf.mxu0
        %v1584 = vadd.f32 %v1519, %v1583
        %1585 = vmatmul.f32.gmra.mxu0 %v1217
        %v1586 = vpop.f32.mrf.mxu0
        %v1587 = vadd.f32 %v1522, %v1586
        %1588 = vmatmul.f32.gmra.mxu0 %v1220
        %v1589 = vpop.f32.mrf.mxu0
        %v1590 = vadd.f32 %v1525, %v1589
        %1591 = vmatmul.f32.gmra.mxu0 %v1223
        %v1592 = vpop.f32.mrf.mxu0
        %v1593 = vadd.f32 %v1528, %v1592
        %1594 = vmatmul.f32.gmra.mxu0 %v1226
        %v1595 = vpop.f32.mrf.mxu0
        %v1596 = vadd.f32 %v1531, %v1595
        %1597 = vmatmul.f32.gmra.mxu0 %v1229
        %v1598 = vpop.f32.mrf.mxu0
        %v1599 = vadd.f32 %v1534, %v1598
        %1600 = vmatmul.f32.gmra.mxu0 %v1232
        %v1601 = vpop.f32.mrf.mxu0
        %v1602 = vadd.f32 %v1537, %v1601
        %1603 = vdwg.mxu0
        %1604 = vmatpush.msra.mxu0 %v1375
        %1605 = vmatpush.msra.mxu0 %v1372
        %1606 = vmatpush.msra.mxu0 %v1369
        %1607 = vmatpush.msra.mxu0 %v1366
        %1608 = vmatpush.msra.mxu0 %v1363
        %1609 = vmatpush.msra.mxu0 %v1360
        %1610 = vmatpush.msra.mxu0 %v1357
        %1611 = vmatpush.msra.mxu0 %v1354
        %1612 = vmatpush.msra.mxu0 %v1351
        %1613 = vmatpush.msra.mxu0 %v1348
        %1614 = vmatpush.msra.mxu0 %v1345
        %1615 = vmatpush.msra.mxu0 %v1342
        %1616 = vmatpush.msra.mxu0 %v1339
        %1617 = vmatpush.msra.mxu0 %v1336
        %1618 = vmatpush.msra.mxu0 %v1333
        %1619 = vmatpush.msra.mxu0 %v1330
        %1620 = vmatmul.f32.gmra.mxu0 %v1188
        %v1621 = vpop.f32.mrf.mxu0
        %v1622 = vadd.f32 %v1557, %v1621
        %1623 = vmatmul.f32.gmra.mxu0 %v1191
        %v1624 = vpop.f32.mrf.mxu0
        %v1625 = vadd.f32 %v1560, %v1624
        %1626 = vmatmul.f32.gmra.mxu0 %v1194
        %v1627 = vpop.f32.mrf.mxu0
        %v1628 = vadd.f32 %v1563, %v1627
        %1629 = vmatmul.f32.gmra.mxu0 %v1197
        %v1630 = vpop.f32.mrf.mxu0
        %v1631 = vadd.f32 %v1566, %v1630
        %1632 = vmatmul.f32.gmra.mxu0 %v1200
        %v1633 = vpop.f32.mrf.mxu0
        %v1634 = vadd.f32 %v1569, %v1633
        %1635 = vmatmul.f32.gmra.mxu0 %v1203
        %v1636 = vpop.f32.mrf.mxu0
        %v1637 = vadd.f32 %v1572, %v1636
        %1638 = vmatmul.f32.gmra.mxu0 %v1206
        %v1639 = vpop.f32.mrf.mxu0
        %v1640 = vadd.f32 %v1575, %v1639
        %1641 = vmatmul.f32.gmra.mxu0 %v1209
        %v1642 = vpop.f32.mrf.mxu0
        %v1643 = vadd.f32 %v1578, %v1642
        %1644 = vmatmul.f32.gmra.mxu0 %v1212
        %v1645 = vpop.f32.mrf.mxu0
        %v1646 = vadd.f32 %v1581, %v1645
        %1647 = vmatmul.f32.gmra.mxu0 %v1215
        %v1648 = vpop.f32.mrf.mxu0
        %v1649 = vadd.f32 %v1584, %v1648
        %1650 = vmatmul.f32.gmra.mxu0 %v1218
        %v1651 = vpop.f32.mrf.mxu0
        %v1652 = vadd.f32 %v1587, %v1651
        %1653 = vmatmul.f32.gmra.mxu0 %v1221
        %v1654 = vpop.f32.mrf.mxu0
        %v1655 = vadd.f32 %v1590, %v1654
        %1656 = vmatmul.f32.gmra.mxu0 %v1224
        %v1657 = vpop.f32.mrf.mxu0
        %v1658 = vadd.f32 %v1593, %v1657
        %1659 = vmatmul.f32.gmra.mxu0 %v1227
        %v1660 = vpop.f32.mrf.mxu0
        %v1661 = vadd.f32 %v1596, %v1660
        %1662 = vmatmul.f32.gmra.mxu0 %v1230
        %v1663 = vpop.f32.mrf.mxu0
        %v1664 = vadd.f32 %v1599, %v1663
        %1665 = vmatmul.f32.gmra.mxu0 %v1233
        %v1666 = vpop.f32.mrf.mxu0
        %v1667 = vadd.f32 %v1602, %v1666
        %1668 = vdwg.mxu0
        %1669 = vmatpush.msra.mxu0 %v1280
        %1670 = vmatpush.msra.mxu0 %v1277
        %1671 = vmatpush.msra.mxu0 %v1274
        %1672 = vmatpush.msra.mxu0 %v1271
        %1673 = vmatpush.msra.mxu0 %v1268
        %1674 = vmatpush.msra.mxu0 %v1265
        %1675 = vmatpush.msra.mxu0 %v1262
        %1676 = vmatpush.msra.mxu0 %v1259
        %1677 = vmatpush.msra.mxu0 %v1256
        %1678 = vmatpush.msra.mxu0 %v1253
        %1679 = vmatpush.msra.mxu0 %v1250
        %1680 = vmatpush.msra.mxu0 %v1247
        %1681 = vmatpush.msra.mxu0 %v1244
        %1682 = vmatpush.msra.mxu0 %v1241
        %1683 = vmatpush.msra.mxu0 %v1238
        %1684 = vmatpush.msra.mxu0 %v1235
        %1685 = vmatmul.f32.gmra.mxu0 %v1186
        %v1686 = vpop.f32.mrf.mxu0
        %v1687 = vadd.f32 %v1397, %v1686
        %1688 = vmatmul.f32.gmra.mxu0 %v1189
        %v1689 = vpop.f32.mrf.mxu0
        %v1690 = vadd.f32 %v1402, %v1689
        %1691 = vmatmul.f32.gmra.mxu0 %v1192
        %v1692 = vpop.f32.mrf.mxu0
        %v1693 = vadd.f32 %v1407, %v1692
        %1694 = vmatmul.f32.gmra.mxu0 %v1195
        %v1695 = vpop.f32.mrf.mxu0
        %v1696 = vadd.f32 %v1412, %v1695
        %1697 = vmatmul.f32.gmra.mxu0 %v1198
        %v1698 = vpop.f32.mrf.mxu0
        %v1699 = vadd.f32 %v1417, %v1698
        %1700 = vmatmul.f32.gmra.mxu0 %v1201
        %v1701 = vpop.f32.mrf.mxu0
        %v1702 = vadd.f32 %v1422, %v1701
        %1703 = vmatmul.f32.gmra.mxu0 %v1204
        %v1704 = vpop.f32.mrf.mxu0
        %v1705 = vadd.f32 %v1427, %v1704
        %1706 = vmatmul.f32.gmra.mxu0 %v1207
        %v1707 = vpop.f32.mrf.mxu0
        %v1708 = vadd.f32 %v1432, %v1707
        %1709 = vmatmul.f32.gmra.mxu0 %v1210
        %v1710 = vpop.f32.mrf.mxu0
        %v1711 = vadd.f32 %v1437, %v1710
        %1712 = vmatmul.f32.gmra.mxu0 %v1213
        %v1713 = vpop.f32.mrf.mxu0
        %v1714 = vadd.f32 %v1442, %v1713
        %1715 = vmatmul.f32.gmra.mxu0 %v1216
        %v1716 = vpop.f32.mrf.mxu0
        %v1717 = vadd.f32 %v1447, %v1716
        %1718 = vmatmul.f32.gmra.mxu0 %v1219
        %v1719 = vpop.f32.mrf.mxu0
        %v1720 = vadd.f32 %v1452, %v1719
        %1721 = vmatmul.f32.gmra.mxu0 %v1222
        %v1722 = vpop.f32.mrf.mxu0
        %v1723 = vadd.f32 %v1457, %v1722
        %1724 = vmatmul.f32.gmra.mxu0 %v1225
        %v1725 = vpop.f32.mrf.mxu0
        %v1726 = vadd.f32 %v1462, %v1725
        %1727 = vmatmul.f32.gmra.mxu0 %v1228
        %v1728 = vpop.f32.mrf.mxu0
        %v1729 = vadd.f32 %v1467, %v1728
        %1730 = vmatmul.f32.gmra.mxu0 %v1231
        %v1731 = vpop.f32.mrf.mxu0
        %v1732 = vadd.f32 %v1472, %v1731
        %1733 = vdwg.mxu0
        %1734 = vmatpush.msra.mxu0 %v1328
        %1735 = vmatpush.msra.mxu0 %v1325
        %1736 = vmatpush.msra.mxu0 %v1322
        %1737 = vmatpush.msra.mxu0 %v1319
        %1738 = vmatpush.msra.mxu0 %v1316
        %1739 = vmatpush.msra.mxu0 %v1313
        %1740 = vmatpush.msra.mxu0 %v1310
        %1741 = vmatpush.msra.mxu0 %v1307
        %1742 = vmatpush.msra.mxu0 %v1304
        %1743 = vmatpush.msra.mxu0 %v1301
        %1744 = vmatpush.msra.mxu0 %v1298
        %1745 = vmatpush.msra.mxu0 %v1295
        %1746 = vmatpush.msra.mxu0 %v1292
        %1747 = vmatpush.msra.mxu0 %v1289
        %1748 = vmatpush.msra.mxu0 %v1286
        %1749 = vmatpush.msra.mxu0 %v1283
        %1750 = vmatmul.f32.gmra.mxu0 %v1187
        %v1751 = vpop.f32.mrf.mxu0
        %v1752 = vadd.f32 %v1687, %v1751
        %1753 = vmatmul.f32.gmra.mxu0 %v1190
        %v1754 = vpop.f32.mrf.mxu0
        %v1755 = vadd.f32 %v1690, %v1754
        %1756 = vmatmul.f32.gmra.mxu0 %v1193
        %v1757 = vpop.f32.mrf.mxu0
        %v1758 = vadd.f32 %v1693, %v1757
        %1759 = vmatmul.f32.gmra.mxu0 %v1196
        %v1760 = vpop.f32.mrf.mxu0
        %v1761 = vadd.f32 %v1696, %v1760
        %1762 = vmatmul.f32.gmra.mxu0 %v1199
        %v1763 = vpop.f32.mrf.mxu0
        %v1764 = vadd.f32 %v1699, %v1763
        %1765 = vmatmul.f32.gmra.mxu0 %v1202
        %v1766 = vpop.f32.mrf.mxu0
        %v1767 = vadd.f32 %v1702, %v1766
        %1768 = vmatmul.f32.gmra.mxu0 %v1205
        %v1769 = vpop.f32.mrf.mxu0
        %v1770 = vadd.f32 %v1705, %v1769
        %1771 = vmatmul.f32.gmra.mxu0 %v1208
        %v1772 = vpop.f32.mrf.mxu0
        %v1773 = vadd.f32 %v1708, %v1772
        %1774 = vmatmul.f32.gmra.mxu0 %v1211
        %v1775 = vpop.f32.mrf.mxu0
        %v1776 = vadd.f32 %v1711, %v1775
        %1777 = vmatmul.f32.gmra.mxu0 %v1214
        %v1778 = vpop.f32.mrf.mxu0
        %v1779 = vadd.f32 %v1714, %v1778
        %1780 = vmatmul.f32.gmra.mxu0 %v1217
        %v1781 = vpop.f32.mrf.mxu0
        %v1782 = vadd.f32 %v1717, %v1781
        %1783 = vmatmul.f32.gmra.mxu0 %v1220
        %v1784 = vpop.f32.mrf.mxu0
        %v1785 = vadd.f32 %v1720, %v1784
        %1786 = vmatmul.f32.gmra.mxu0 %v1223
        %v1787 = vpop.f32.mrf.mxu0
        %v1788 = vadd.f32 %v1723, %v1787
        %1789 = vmatmul.f32.gmra.mxu0 %v1226
        %v1790 = vpop.f32.mrf.mxu0
        %v1791 = vadd.f32 %v1726, %v1790
        %1792 = vmatmul.f32.gmra.mxu0 %v1229
        %v1793 = vpop.f32.mrf.mxu0
        %v1794 = vadd.f32 %v1729, %v1793
        %1795 = vmatmul.f32.gmra.mxu0 %v1232
        %v1796 = vpop.f32.mrf.mxu0
        %v1797 = vadd.f32 %v1732, %v1796
        %1798 = vdwg.mxu0
        %1799 = vmatpush.msra.mxu0 %v1376
        %1800 = vmatpush.msra.mxu0 %v1373
        %1801 = vmatpush.msra.mxu0 %v1370
        %1802 = vmatpush.msra.mxu0 %v1367
        %1803 = vmatpush.msra.mxu0 %v1364
        %1804 = vmatpush.msra.mxu0 %v1361
        %1805 = vmatpush.msra.mxu0 %v1358
        %1806 = vmatpush.msra.mxu0 %v1355
        %1807 = vmatpush.msra.mxu0 %v1352
        %1808 = vmatpush.msra.mxu0 %v1349
        %1809 = vmatpush.msra.mxu0 %v1346
        %1810 = vmatpush.msra.mxu0 %v1343
        %1811 = vmatpush.msra.mxu0 %v1340
        %1812 = vmatpush.msra.mxu0 %v1337
        %1813 = vmatpush.msra.mxu0 %v1334
        %1814 = vmatpush.msra.mxu0 %v1331
        %1815 = vmatmul.f32.gmra.mxu0 %v1188
        %v1816 = vpop.f32.mrf.mxu0
        %v1817 = vadd.f32 %v1752, %v1816
        %1818 = vmatmul.f32.gmra.mxu0 %v1191
        %v1819 = vpop.f32.mrf.mxu0
        %v1820 = vadd.f32 %v1755, %v1819
        %1821 = vmatmul.f32.gmra.mxu0 %v1194
        %v1822 = vpop.f32.mrf.mxu0
        %v1823 = vadd.f32 %v1758, %v1822
        %1824 = vmatmul.f32.gmra.mxu0 %v1197
        %v1825 = vpop.f32.mrf.mxu0
        %v1826 = vadd.f32 %v1761, %v1825
        %1827 = vmatmul.f32.gmra.mxu0 %v1200
        %v1828 = vpop.f32.mrf.mxu0
        %v1829 = vadd.f32 %v1764, %v1828
        %1830 = vmatmul.f32.gmra.mxu0 %v1203
        %v1831 = vpop.f32.mrf.mxu0
        %v1832 = vadd.f32 %v1767, %v1831
        %1833 = vmatmul.f32.gmra.mxu0 %v1206
        %v1834 = vpop.f32.mrf.mxu0
        %v1835 = vadd.f32 %v1770, %v1834
        %1836 = vmatmul.f32.gmra.mxu0 %v1209
        %v1837 = vpop.f32.mrf.mxu0
        %v1838 = vadd.f32 %v1773, %v1837
        %1839 = vmatmul.f32.gmra.mxu0 %v1212
        %v1840 = vpop.f32.mrf.mxu0
        %v1841 = vadd.f32 %v1776, %v1840
        %1842 = vmatmul.f32.gmra.mxu0 %v1215
        %v1843 = vpop.f32.mrf.mxu0
        %v1844 = vadd.f32 %v1779, %v1843
        %1845 = vmatmul.f32.gmra.mxu0 %v1218
        %v1846 = vpop.f32.mrf.mxu0
        %v1847 = vadd.f32 %v1782, %v1846
        %1848 = vmatmul.f32.gmra.mxu0 %v1221
        %v1849 = vpop.f32.mrf.mxu0
        %v1850 = vadd.f32 %v1785, %v1849
        %1851 = vmatmul.f32.gmra.mxu0 %v1224
        %v1852 = vpop.f32.mrf.mxu0
        %v1853 = vadd.f32 %v1788, %v1852
        %1854 = vmatmul.f32.gmra.mxu0 %v1227
        %v1855 = vpop.f32.mrf.mxu0
        %v1856 = vadd.f32 %v1791, %v1855
        %1857 = vmatmul.f32.gmra.mxu0 %v1230
        %v1858 = vpop.f32.mrf.mxu0
        %v1859 = vadd.f32 %v1794, %v1858
        %1860 = vmatmul.f32.gmra.mxu0 %v1233
        %v1861 = vpop.f32.mrf.mxu0
        %v1862 = vadd.f32 %v1797, %v1861
        %1863 = vdwg.mxu0
        %1864 = vmatpush.msra.mxu0 %v1281
        %1865 = vmatpush.msra.mxu0 %v1278
        %1866 = vmatpush.msra.mxu0 %v1275
        %1867 = vmatpush.msra.mxu0 %v1272
        %1868 = vmatpush.msra.mxu0 %v1269
        %1869 = vmatpush.msra.mxu0 %v1266
        %1870 = vmatpush.msra.mxu0 %v1263
        %1871 = vmatpush.msra.mxu0 %v1260
        %1872 = vmatpush.msra.mxu0 %v1257
        %1873 = vmatpush.msra.mxu0 %v1254
        %1874 = vmatpush.msra.mxu0 %v1251
        %1875 = vmatpush.msra.mxu0 %v1248
        %1876 = vmatpush.msra.mxu0 %v1245
        %1877 = vmatpush.msra.mxu0 %v1242
        %1878 = vmatpush.msra.mxu0 %v1239
        %1879 = vmatpush.msra.mxu0 %v1236
        %1880 = vmatmul.f32.gmra.mxu0 %v1186
        %v1881 = vpop.f32.mrf.mxu0
        %v1882 = vadd.f32 %v1397, %v1881
        %1883 = vmatmul.f32.gmra.mxu0 %v1189
        %v1884 = vpop.f32.mrf.mxu0
        %v1885 = vadd.f32 %v1402, %v1884
        %1886 = vmatmul.f32.gmra.mxu0 %v1192
        %v1887 = vpop.f32.mrf.mxu0
        %v1888 = vadd.f32 %v1407, %v1887
        %1889 = vmatmul.f32.gmra.mxu0 %v1195
        %v1890 = vpop.f32.mrf.mxu0
        %v1891 = vadd.f32 %v1412, %v1890
        %1892 = vmatmul.f32.gmra.mxu0 %v1198
        %v1893 = vpop.f32.mrf.mxu0
        %v1894 = vadd.f32 %v1417, %v1893
        %1895 = vmatmul.f32.gmra.mxu0 %v1201
        %v1896 = vpop.f32.mrf.mxu0
        %v1897 = vadd.f32 %v1422, %v1896
        %1898 = vmatmul.f32.gmra.mxu0 %v1204
        %v1899 = vpop.f32.mrf.mxu0
        %v1900 = vadd.f32 %v1427, %v1899
        %1901 = vmatmul.f32.gmra.mxu0 %v1207
        %v1902 = vpop.f32.mrf.mxu0
        %v1903 = vadd.f32 %v1432, %v1902
        %1904 = vmatmul.f32.gmra.mxu0 %v1210
        %v1905 = vpop.f32.mrf.mxu0
        %v1906 = vadd.f32 %v1437, %v1905
        %1907 = vmatmul.f32.gmra.mxu0 %v1213
        %v1908 = vpop.f32.mrf.mxu0
        %v1909 = vadd.f32 %v1442, %v1908
        %1910 = vmatmul.f32.gmra.mxu0 %v1216
        %v1911 = vpop.f32.mrf.mxu0
        %v1912 = vadd.f32 %v1447, %v1911
        %1913 = vmatmul.f32.gmra.mxu0 %v1219
        %v1914 = vpop.f32.mrf.mxu0
        %v1915 = vadd.f32 %v1452, %v1914
        %1916 = vmatmul.f32.gmra.mxu0 %v1222
        %v1917 = vpop.f32.mrf.mxu0
        %v1918 = vadd.f32 %v1457, %v1917
        %1919 = vmatmul.f32.gmra.mxu0 %v1225
        %v1920 = vpop.f32.mrf.mxu0
        %v1921 = vadd.f32 %v1462, %v1920
        %1922 = vmatmul.f32.gmra.mxu0 %v1228
        %v1923 = vpop.f32.mrf.mxu0
        %v1924 = vadd.f32 %v1467, %v1923
        %1925 = vmatmul.f32.gmra.mxu0 %v1231
        %v1926 = vpop.f32.mrf.mxu0
        %v1927 = vadd.f32 %v1472, %v1926
        %1928 = vdwg.mxu0
        %1929 = vmatpush.msra.mxu0 %v1329
        %1930 = vmatpush.msra.mxu0 %v1326
        %1931 = vmatpush.msra.mxu0 %v1323
        %1932 = vmatpush.msra.mxu0 %v1320
        %1933 = vmatpush.msra.mxu0 %v1317
        %1934 = vmatpush.msra.mxu0 %v1314
        %1935 = vmatpush.msra.mxu0 %v1311
        %1936 = vmatpush.msra.mxu0 %v1308
        %1937 = vmatpush.msra.mxu0 %v1305
        %1938 = vmatpush.msra.mxu0 %v1302
        %1939 = vmatpush.msra.mxu0 %v1299
        %1940 = vmatpush.msra.mxu0 %v1296
        %1941 = vmatpush.msra.mxu0 %v1293
        %1942 = vmatpush.msra.mxu0 %v1290
        %1943 = vmatpush.msra.mxu0 %v1287
        %1944 = vmatpush.msra.mxu0 %v1284
        %1945 = vmatmul.f32.gmra.mxu0 %v1187
        %v1946 = vpop.f32.mrf.mxu0
        %v1947 = vadd.f32 %v1882, %v1946
        %1948 = vmatmul.f32.gmra.mxu0 %v1190
        %v1949 = vpop.f32.mrf.mxu0
        %v1950 = vadd.f32 %v1885, %v1949
        %1951 = vmatmul.f32.gmra.mxu0 %v1193
        %v1952 = vpop.f32.mrf.mxu0
        %v1953 = vadd.f32 %v1888, %v1952
        %1954 = vmatmul.f32.gmra.mxu0 %v1196
        %v1955 = vpop.f32.mrf.mxu0
        %v1956 = vadd.f32 %v1891, %v1955
        %1957 = vmatmul.f32.gmra.mxu0 %v1199
        %v1958 = vpop.f32.mrf.mxu0
        %v1959 = vadd.f32 %v1894, %v1958
        %1960 = vmatmul.f32.gmra.mxu0 %v1202
        %v1961 = vpop.f32.mrf.mxu0
        %v1962 = vadd.f32 %v1897, %v1961
        %1963 = vmatmul.f32.gmra.mxu0 %v1205
        %v1964 = vpop.f32.mrf.mxu0
        %v1965 = vadd.f32 %v1900, %v1964
        %1966 = vmatmul.f32.gmra.mxu0 %v1208
        %v1967 = vpop.f32.mrf.mxu0
        %v1968 = vadd.f32 %v1903, %v1967
        %1969 = vmatmul.f32.gmra.mxu0 %v1211
        %v1970 = vpop.f32.mrf.mxu0
        %v1971 = vadd.f32 %v1906, %v1970
        %1972 = vmatmul.f32.gmra.mxu0 %v1214
        %v1973 = vpop.f32.mrf.mxu0
        %v1974 = vadd.f32 %v1909, %v1973
        %1975 = vmatmul.f32.gmra.mxu0 %v1217
        %v1976 = vpop.f32.mrf.mxu0
        %v1977 = vadd.f32 %v1912, %v1976
        %1978 = vmatmul.f32.gmra.mxu0 %v1220
        %v1979 = vpop.f32.mrf.mxu0
        %v1980 = vadd.f32 %v1915, %v1979
        %1981 = vmatmul.f32.gmra.mxu0 %v1223
        %v1982 = vpop.f32.mrf.mxu0
        %v1983 = vadd.f32 %v1918, %v1982
        %1984 = vmatmul.f32.gmra.mxu0 %v1226
        %v1985 = vpop.f32.mrf.mxu0
        %v1986 = vadd.f32 %v1921, %v1985
        %1987 = vmatmul.f32.gmra.mxu0 %v1229
        %v1988 = vpop.f32.mrf.mxu0
        %v1989 = vadd.f32 %v1924, %v1988
        %1990 = vmatmul.f32.gmra.mxu0 %v1232
        %v1991 = vpop.f32.mrf.mxu0
        %v1992 = vadd.f32 %v1927, %v1991
        %1993 = vdwg.mxu0
        %1994 = vmatpush.msra.mxu0 %v1377
        %1995 = vmatpush.msra.mxu0 %v1374
        %1996 = vmatpush.msra.mxu0 %v1371
        %1997 = vmatpush.msra.mxu0 %v1368
        %1998 = vmatpush.msra.mxu0 %v1365
        %1999 = vmatpush.msra.mxu0 %v1362
        %2000 = vmatpush.msra.mxu0 %v1359
        %2001 = vmatpush.msra.mxu0 %v1356
        %2002 = vmatpush.msra.mxu0 %v1353
        %2003 = vmatpush.msra.mxu0 %v1350
        %2004 = vmatpush.msra.mxu0 %v1347
        %2005 = vmatpush.msra.mxu0 %v1344
        %2006 = vmatpush.msra.mxu0 %v1341
        %2007 = vmatpush.msra.mxu0 %v1338
        %2008 = vmatpush.msra.mxu0 %v1335
        %2009 = vmatpush.msra.mxu0 %v1332
        %2010 = vmatmul.f32.gmra.mxu0 %v1188
        %v2011 = vpop.f32.mrf.mxu0
        %v2012 = vadd.f32 %v1947, %v2011
        %2013 = vmatmul.f32.gmra.mxu0 %v1191
        %v2014 = vpop.f32.mrf.mxu0
        %v2015 = vadd.f32 %v1950, %v2014
        %2016 = vmatmul.f32.gmra.mxu0 %v1194
        %v2017 = vpop.f32.mrf.mxu0
        %v2018 = vadd.f32 %v1953, %v2017
        %2019 = vmatmul.f32.gmra.mxu0 %v1197
        %v2020 = vpop.f32.mrf.mxu0
        %v2021 = vadd.f32 %v1956, %v2020
        %2022 = vmatmul.f32.gmra.mxu0 %v1200
        %v2023 = vpop.f32.mrf.mxu0
        %v2024 = vadd.f32 %v1959, %v2023
        %2025 = vmatmul.f32.gmra.mxu0 %v1203
        %v2026 = vpop.f32.mrf.mxu0
        %v2027 = vadd.f32 %v1962, %v2026
        %2028 = vmatmul.f32.gmra.mxu0 %v1206
        %v2029 = vpop.f32.mrf.mxu0
        %v2030 = vadd.f32 %v1965, %v2029
        %2031 = vmatmul.f32.gmra.mxu0 %v1209
        %v2032 = vpop.f32.mrf.mxu0
        %v2033 = vadd.f32 %v1968, %v2032
        %2034 = vmatmul.f32.gmra.mxu0 %v1212
        %v2035 = vpop.f32.mrf.mxu0
        %v2036 = vadd.f32 %v1971, %v2035
        %2037 = vmatmul.f32.gmra.mxu0 %v1215
        %v2038 = vpop.f32.mrf.mxu0
        %v2039 = vadd.f32 %v1974, %v2038
        %2040 = vmatmul.f32.gmra.mxu0 %v1218
        %v2041 = vpop.f32.mrf.mxu0
        %v2042 = vadd.f32 %v1977, %v2041
        %2043 = vmatmul.f32.gmra.mxu0 %v1221
        %v2044 = vpop.f32.mrf.mxu0
        %v2045 = vadd.f32 %v1980, %v2044
        %2046 = vmatmul.f32.gmra.mxu0 %v1224
        %v2047 = vpop.f32.mrf.mxu0
        %v2048 = vadd.f32 %v1983, %v2047
        %2049 = vmatmul.f32.gmra.mxu0 %v1227
        %v2050 = vpop.f32.mrf.mxu0
        %v2051 = vadd.f32 %v1986, %v2050
        %2052 = vmatmul.f32.gmra.mxu0 %v1230
        %v2053 = vpop.f32.mrf.mxu0
        %v2054 = vadd.f32 %v1989, %v2053
        %2055 = vmatmul.f32.gmra.mxu0 %v1233
        %v2056 = vpop.f32.mrf.mxu0
        %v2057 = vadd.f32 %v1992, %v2056
        %2058 = vdwg.mxu0
        %2059 = vst [vmem:[%s219] sm:$0xff] %v1622
        %2060 = vst [vmem:[%s219 + $0x8] sm:$0xff] %v1817
        %2061 = vst [vmem:[%s219 + $0x10] sm:$0xff] %v2012
        %2062 = vst [vmem:[%s219 + $0x18] sm:$0xff] %v1625
        %2063 = vst [vmem:[%s219 + $0x20] sm:$0xff] %v1820
        %2064 = vst [vmem:[%s219 + $0x28] sm:$0xff] %v2015
        %2065 = vst [vmem:[%s219 + $0x30] sm:$0xff] %v1628
        %2066 = vst [vmem:[%s219 + $0x38] sm:$0xff] %v1823
        %2067 = vst [vmem:[%s219 + $0x40] sm:$0xff] %v2018
        %2068 = vst [vmem:[%s219 + $0x48] sm:$0xff] %v1631
        %2069 = vst [vmem:[%s219 + $0x50] sm:$0xff] %v1826
        %2070 = vst [vmem:[%s219 + $0x58] sm:$0xff] %v2021
        %2071 = vst [vmem:[%s219 + $0x60] sm:$0xff] %v1634
        %2072 = vst [vmem:[%s219 + $0x68] sm:$0xff] %v1829
        %2073 = vst [vmem:[%s219 + $0x70] sm:$0xff] %v2024
        %2074 = vst [vmem:[%s219 + $0x78] sm:$0xff] %v1637
        %2075 = vst [vmem:[%s219 + $0x80] sm:$0xff] %v1832
        %2076 = vst [vmem:[%s219 + $0x88] sm:$0xff] %v2027
        %2077 = vst [vmem:[%s219 + $0x90] sm:$0xff] %v1640
        %2078 = vst [vmem:[%s219 + $0x98] sm:$0xff] %v1835
        %2079 = vst [vmem:[%s219 + $0xa0] sm:$0xff] %v2030
        %2080 = vst [vmem:[%s219 + $0xa8] sm:$0xff] %v1643
        %2081 = vst [vmem:[%s219 + $0xb0] sm:$0xff] %v1838
        %2082 = vst [vmem:[%s219 + $0xb8] sm:$0xff] %v2033
        %2083 = vst [vmem:[%s219 + $0xc0] sm:$0xff] %v1646
        %2084 = vst [vmem:[%s219 + $0xc8] sm:$0xff] %v1841
        %2085 = vst [vmem:[%s219 + $0xd0] sm:$0xff] %v2036
        %2086 = vst [vmem:[%s219 + $0xd8] sm:$0xff] %v1649
        %2087 = vst [vmem:[%s219 + $0xe0] sm:$0xff] %v1844
        %2088 = vst [vmem:[%s219 + $0xe8] sm:$0xff] %v2039
        %2089 = vst [vmem:[%s219 + $0xf0] sm:$0xff] %v1652
        %2090 = vst [vmem:[%s219 + $0xf8] sm:$0xff] %v1847
        %2091 = vst [vmem:[%s219 + $0x100] sm:$0xff] %v2042
        %2092 = vst [vmem:[%s219 + $0x108] sm:$0xff] %v1655
        %2093 = vst [vmem:[%s219 + $0x110] sm:$0xff] %v1850
        %2094 = vst [vmem:[%s219 + $0x118] sm:$0xff] %v2045
        %2095 = vst [vmem:[%s219 + $0x120] sm:$0xff] %v1658
        %2096 = vst [vmem:[%s219 + $0x128] sm:$0xff] %v1853
        %2097 = vst [vmem:[%s219 + $0x130] sm:$0xff] %v2048
        %2098 = vst [vmem:[%s219 + $0x138] sm:$0xff] %v1661
        %2099 = vst [vmem:[%s219 + $0x140] sm:$0xff] %v1856
        %2100 = vst [vmem:[%s219 + $0x148] sm:$0xff] %v2051
        %2101 = vst [vmem:[%s219 + $0x150] sm:$0xff] %v1664
        %2102 = vst [vmem:[%s219 + $0x158] sm:$0xff] %v1859
        %2103 = vst [vmem:[%s219 + $0x160] sm:$0xff] %v2054
        %2104 = vst [vmem:[%s219 + $0x168] sm:$0xff] %v1667
        %2105 = vst [vmem:[%s219 + $0x170] sm:$0xff] %v1862
        %2106 = vst [vmem:[%s219 + $0x178] sm:$0xff] %v2057
        %s2107 = sand.u32 %s118, 1
        %s2108 = scalar_lea.sflag [#allocation5], %s2107
        %s2109 = sand.u32 %s118, 1
        %s2110 = smul.addr %s2109, 384
        %s2111 = scalar_lea.vmem [#allocation6], %s2110
        // Predicated region
        $region41: #{tpu_custom_call.1} parent=31 // pred_check
          %p2112 = pneg %p128
        $region42: #{tpu_custom_call.1} parent=31 // pred_check_branch
          %2114 = sbr.rel (%p2112) target = $region44
        $region43: #{tpu_custom_call.1} parent=31 // pred_region
          %s2115 = smul.u32 16, %s23
          %2117 = vsyncadd %s2108, 0
          %s2118 = smul.addr %s2115, 3
          %s2119 = smul.addr %s22, 48
          %s2120 = sadd.s32 %s2118, %s2119
          %s2121 = smul.addr %s2120, 8
          %s2122 = scalar_lea.hbm %s3, %s2121
          %s2123 = sshll.u32 %s2111, 4
          %s2124 = int_to_ptr.vmem [resolvable:$true] %s2123
          %s2125 = sshll.u32 %s2122, 4
          %s2126 = int_to_ptr.hbm [resolvable:$true] %s2125
          %2131 = dma.vmem_to_hbm [thread:$0]  %s2124, 6144, %s2126, %s2108, 384, 384, 24
        $region44: #{tpu_custom_call.1} parent=31 // pred_fallthru
          _
      $region32: #{tpu_custom_call.1} parent=5 // pred_fallthru
        _
      %p2132 = scmp.le.s32.totalorder 2, %s13
      // Predicated region
      $region45: #{tpu_custom_call.1} parent=5 // pred_check
        %p2133 = pneg %p2132
      $region46: #{tpu_custom_call.1} parent=5 // pred_check_branch
        %2135 = sbr.rel (%p2133) target = $region48
      $region47: #{tpu_custom_call.1} parent=5 // pred_region
        %s2136 = ssub.s32 %s13, 2
        // Predicated region
        $region49: #{tpu_custom_call.1} parent=47 // pred_check
          %p2137 = pneg %p134
        $region50: #{tpu_custom_call.1} parent=47 // pred_check_branch
          %2139 = sbr.rel (%p2137) target = $region52
        $region51: #{tpu_custom_call.1} parent=47 // pred_region
          %s2140 = sand.u32 %s119, 1
          %s2141 = scalar_lea.sflag [#allocation5], %s2140
          %s2142 = sand.u32 %s119, 1
          %s2143 = smul.addr %s2142, 384
          %s2144 = scalar_lea.vmem [#allocation6], %s2143
          %2146 = dma.done %s2141, 6144
        $region52: #{tpu_custom_call.1} parent=47 // pred_fallthru
          _
      $region48: #{tpu_custom_call.1} parent=5 // pred_fallthru
        _
    $region6: #{tpu_custom_call.1} parent=1 // loop_footer
      %s17 = sadd.s32 1, %s13
    $region7: #{tpu_custom_call.1} parent=1 // loop_footer_branch
      %12 = sbr.rel target = $region3
    $region8: #{tpu_custom_call.1} parent=1 // loop_exit
      _
    %2147 = vsyncpa [#allocation4], 1
    %s2148 = scalar_lea.sflag [#allocation4], 1
    %2149 = vsyncpa %s2148, 1
    %2150 = vsyncpa [#allocation5], 1
    %s2151 = scalar_lea.sflag [#allocation5], 1
    %2152 = vsyncpa %s2151, 1

</llo_original>
